<compile_context>
chip_gen: v6e
topology: v6e:2x2x1
jax: 0.10.0
libtpu: 0.0.40
codegen_flags: <defaults>
</compile_context>

<pallas_src>
import math
import jax
import jax.numpy as jnp
from jax.experimental import pallas as pl
from jax.experimental.pallas import tpu as pltpu

# ---------------- configuration (small, consistent with the module) -----------
BATCH = 2
NUM_PATCH = 8
HEADS = 4
DIM_HEAD = 8
EMBED_DIM = HEADS * DIM_HEAD          # 32  (== inner_dim, required for residual)
CLASS_EMBED_DIM = 16
MLP_DIM = EMBED_DIM                   # required so BatchNorm1d(dim) matches hidden
DEPTH = 2

D = EMBED_DIM + CLASS_EMBED_DIM       # 48  (token feature dim)
INNER = HEADS * DIM_HEAD              # 32
V_DIM = INNER + CLASS_EMBED_DIM       # 48
HIDDEN = MLP_DIM + CLASS_EMBED_DIM    # 48
SCALE = DIM_HEAD ** -0.5
EPS = 1e-5
INV_SQRT2 = 1.0 / math.sqrt(2.0)
GELU_TANH_C = math.sqrt(2.0 / math.pi)

T = BATCH * NUM_PATCH                 # 16 flattened tokens (sublane axis)
DP = 128                              # lane-padded feature width


# ------------------------------ kernel ------------------------------------------
def _bn_train(x):
    """BatchNorm1d (training mode, gamma=1, beta=0): per-channel stats over rows.
    Single-pass biased variance; all-zero (padded) lanes stay exactly zero."""
    mean = jnp.mean(x, axis=0, keepdims=True)
    var = jnp.maximum(jnp.mean(x * x, axis=0, keepdims=True) - mean * mean, 0.0)
    return (x - mean) * jax.lax.rsqrt(var + EPS)


def fused_transformer_kernel(x_ref, wqk_ref, wv_ref, w1_ref, w2_ref, b2_ref, o_ref):
    """Whole DEPTH-layer forward in a single invocation.

    x_ref/o_ref: (T=16, 128) f32 lane-dense tiles; weights are (DEPTH, 128, 128)
    bf16 (wqk is the folded Wq @ Wk^T); b2 is (DEPTH, 1, 128) f32.
    The running activation `x` lives in vregs/VMEM for the whole forward.
    """
    x = x_ref[...]                                            # (T, DP) f32

    for l in range(DEPTH):                                    # DEPTH=2, unrolled
        wqk = wqk_ref[l]                                      # (DP, DP) bf16
        wv = wv_ref[l]
        w1 = w1_ref[l]
        w2 = w2_ref[l]
        b2 = b2_ref[l]                                        # (1, DP) f32

        # ---- x = x + Attention(PreNorm(x)) ----
        xn = _bn_train(x)
        xnb = xn.astype(jnp.bfloat16)
        # dots = q @ k^T = xn (Wq Wk^T) xn^T  -- Wq@Wk^T folded host-side.
        tmp = jnp.dot(xnb, wqk, preferred_element_type=jnp.float32)   # (T, DP)
        v = jnp.dot(xnb, wv, preferred_element_type=jnp.float32)      # (T, DP)
        dots = jax.lax.dot_general(
            tmp.astype(jnp.bfloat16), xnb, (((1,), (1,)), ((), ())),
            preferred_element_type=jnp.float32) * SCALE                # (T, T)
        # BN'd inputs, 32-wide contraction, 0.354 scale => |dots| small: no
        # row-max stabilization needed (saves an XLU reduce on the serial chain).
        e = jnp.exp(dots)
        attn = e * pl.reciprocal(jnp.sum(e, axis=-1, keepdims=True), approx=True)
        x = x + jnp.dot(attn.astype(jnp.bfloat16), v.astype(jnp.bfloat16),
                        preferred_element_type=jnp.float32)

        # ---- x = x + FeedForward(PreNorm(x)) ----
        xn = _bn_train(x)
        # b1 dropped: BN right after is invariant to a per-channel constant shift.
        h = jnp.dot(xn.astype(jnp.bfloat16), w1, preferred_element_type=jnp.float32)
        hn = _bn_train(h)                                     # FF-internal BN
        # tanh-approx GELU: tanh goes to the EUP slot instead of a VPU erf poly.
        g = 0.5 * hn * (1.0 + jnp.tanh(GELU_TANH_C * (hn + 0.044715 * hn * hn * hn)))
        y = jnp.dot(g.astype(jnp.bfloat16), w2, preferred_element_type=jnp.float32) + b2
        x = x + y

    o_ref[...] = x


# ------------------------------ wrappers ---------------------------------------
def pack_params(params):
    """Stack per-layer weights with a DEPTH leading dim, zero-pad every feature
    dim to 128 lanes, fold Wq@Wk^T, and cast weights to bf16.  Padding is exact
    (padded rows/cols are zero).  b1 is intentionally not packed (BN no-op)."""
    wqk = jnp.zeros((DEPTH, DP, DP), jnp.float32)
    wv = jnp.zeros((DEPTH, DP, DP), jnp.float32)
    w1 = jnp.zeros((DEPTH, DP, DP), jnp.float32)
    w2 = jnp.zeros((DEPTH, DP, DP), jnp.float32)
    b2 = jnp.zeros((DEPTH, 1, DP), jnp.float32)
    for l, p in enumerate(params):
        wq = p["wqk"][:, :INNER]
        wk = p["wqk"][:, INNER:]
        wqk = wqk.at[l, :EMBED_DIM, :EMBED_DIM].set(wq @ wk.T)   # fold in f32
        wv = wv.at[l, :D, :V_DIM].set(p["wv"])
        w1 = w1.at[l, :D, :HIDDEN].set(p["w1"])
        w2 = w2.at[l, :HIDDEN, :D].set(p["w2"])
        b2 = b2.at[l, 0, :D].set(p["b2"][0])
    wt = jnp.bfloat16
    return wqk.astype(wt), wv.astype(wt), w1.astype(wt), w2.astype(wt), b2


def transformer_forward(x, params):
    """x: (B, N, D) -> (B, N, D).  One pallas_call, no grid, everything in VMEM."""
    b, n, d = x.shape
    xf = x.reshape(b * n, d)
    xp = jnp.zeros((T, DP), jnp.float32).at[:, :d].set(xf)      # lane-pad to 128
    wqk, wv, w1, w2, b2 = pack_params(params)

    vspec = pl.BlockSpec(memory_space=pltpu.MemorySpace.VMEM)   # whole array in VMEM

    out = pl.pallas_call(
        fused_transformer_kernel,
        out_shape=jax.ShapeDtypeStruct((T, DP), jnp.float32),
        in_specs=[vspec] * 6,
        out_specs=vspec,
    )(xp, wqk, wv, w1, w2, b2)

    return out[:, :d].reshape(b, n, d)


# --------------------------- pure-JAX reference --------------------------------
def _bn_ref(x):
    mean = jnp.mean(x, axis=0, keepdims=True)
    var = jnp.mean((x - mean) ** 2, axis=0, keepdims=True)      # biased variance
    return (x - mean) * jax.lax.rsqrt(var + EPS)


def transformer_reference(x, params):
    b, n, d = x.shape
    xf = x.reshape(b * n, d)
    for layer in params:
        xn = _bn_ref(xf)
        qk = xn[:, :EMBED_DIM] @ layer["wqk"]
        q, k = qk[:, :INNER], qk[:, INNER:]
        v = xn @ layer["wv"]
        dots = (q @ k.T) * SCALE
        attn = jax.nn.softmax(dots, axis=-1)
        xf = xf + attn @ v

        xn = _bn_ref(xf)
        h = xn @ layer["w1"] + layer["b1"]
        hn = _bn_ref(h)
        g = 0.5 * hn * (1.0 + jax.lax.erf(hn * INV_SQRT2))      # exact GELU
        xf = xf + g @ layer["w2"] + layer["b2"]
    return xf.reshape(b, n, d)


# ------------------------------- params ----------------------------------------
def init_params(key):
    params = []
    for _ in range(DEPTH):
        key, *ks = jax.random.split(key, 5)

        def u(k, shape, fan_in):
            bound = 1.0 / math.sqrt(fan_in)
            return jax.random.uniform(k, shape, jnp.float32, -bound, bound)

        params.append({
            # stored pre-transposed: y = x @ W
            "wqk": u(ks[0], (EMBED_DIM, 2 * INNER), EMBED_DIM),
            "wv":  u(ks[1], (D, V_DIM), D),
            "w1":  u(ks[2], (D, HIDDEN), D),
            "b1":  jnp.zeros((1, HIDDEN), jnp.float32),
            "w2":  u(ks[3], (HIDDEN, D), HIDDEN),
            "b2":  jnp.zeros((1, D), jnp.float32),
        })
    return params


# -------------------------------- main ------------------------------------------
if __name__ == "__main__":
    key = jax.random.PRNGKey(0)
    kx, kp = jax.random.split(key)
    x = jax.random.normal(kx, (BATCH, NUM_PATCH, D), jnp.float32)
    params = init_params(kp)

    fwd = jax.jit(transformer_forward)
    out = jax.block_until_ready(fwd(x, params))
    ref = jax.block_until_ready(transformer_reference(x, params))

    assert out.shape == (BATCH, NUM_PATCH, D)
    assert bool(jnp.all(jnp.isfinite(out)))
    # bf16 weights + bf16 matmul operands, approx softmax reciprocal and
    # tanh-GELU drift ~1e-2 elementwise vs the exact-f32 reference over 2 layers;
    # gate on aggregate relative L2 error plus a loose elementwise bound.
    rel = float(jnp.linalg.norm(out - ref) / jnp.linalg.norm(ref))
    assert rel < 2e-2, f"relative L2 error too large: {rel}"
    assert jnp.allclose(out, ref, atol=5e-2, rtol=5e-2), "elementwise mismatch vs reference"
    print("KERNEL_OK")
</pallas_src>

<mosaic_0001>
module attributes {stable_mosaic.version = 11 : i64} {
  func.func @fused_transformer_kernel(%arg0: memref<16x128xf32, #tpu.memory_space<vmem>>, %arg1: memref<2x128x128xbf16, #tpu.memory_space<vmem>>, %arg2: memref<2x128x128xbf16, #tpu.memory_space<vmem>>, %arg3: memref<2x128x128xbf16, #tpu.memory_space<vmem>>, %arg4: memref<2x128x128xbf16, #tpu.memory_space<vmem>>, %arg5: memref<2x1x128xf32, #tpu.memory_space<vmem>>, %arg6: memref<16x128xf32, #tpu.memory_space<vmem>>) attributes {dimension_semantics = [], scalar_prefetch = 0 : i64, scratch_operands = 0 : i64, tpu.core_type = #tpu.core_type<tc>} {
    %c0 = arith.constant 0 : index
    %c0_0 = arith.constant 0 : index
    %0 = vector.load %arg0[%c0, %c0_0] : memref<16x128xf32, #tpu.memory_space<vmem>>, vector<16x128xf32>
    %c0_1 = arith.constant 0 : index
    %c0_2 = arith.constant 0 : index
    %c0_3 = arith.constant 0 : index
    %1 = vector.load %arg1[%c0_1, %c0_2, %c0_3] : memref<2x128x128xbf16, #tpu.memory_space<vmem>>, vector<1x128x128xbf16>
    %2 = vector.shape_cast %1 : vector<1x128x128xbf16> to vector<128x128xbf16>
    %c0_4 = arith.constant 0 : index
    %c0_5 = arith.constant 0 : index
    %c0_6 = arith.constant 0 : index
    %3 = vector.load %arg2[%c0_4, %c0_5, %c0_6] : memref<2x128x128xbf16, #tpu.memory_space<vmem>>, vector<1x128x128xbf16>
    %4 = vector.shape_cast %3 : vector<1x128x128xbf16> to vector<128x128xbf16>
    %c0_7 = arith.constant 0 : index
    %c0_8 = arith.constant 0 : index
    %c0_9 = arith.constant 0 : index
    %5 = vector.load %arg3[%c0_7, %c0_8, %c0_9] : memref<2x128x128xbf16, #tpu.memory_space<vmem>>, vector<1x128x128xbf16>
    %6 = vector.shape_cast %5 : vector<1x128x128xbf16> to vector<128x128xbf16>
    %c0_10 = arith.constant 0 : index
    %c0_11 = arith.constant 0 : index
    %c0_12 = arith.constant 0 : index
    %7 = vector.load %arg4[%c0_10, %c0_11, %c0_12] : memref<2x128x128xbf16, #tpu.memory_space<vmem>>, vector<1x128x128xbf16>
    %8 = vector.shape_cast %7 : vector<1x128x128xbf16> to vector<128x128xbf16>
    %c0_13 = arith.constant 0 : index
    %c0_14 = arith.constant 0 : index
    %c0_15 = arith.constant 0 : index
    %9 = vector.load %arg5[%c0_13, %c0_14, %c0_15] : memref<2x1x128xf32, #tpu.memory_space<vmem>>, vector<1x1x128xf32>
    %10 = vector.shape_cast %9 : vector<1x1x128xf32> to vector<1x128xf32>
    %cst = arith.constant dense<0.000000e+00> : vector<128xf32>
    %11 = vector.multi_reduction <add>, %0, %cst [0] : vector<16x128xf32> to vector<128xf32>
    %12 = vector.shape_cast %11 : vector<128xf32> to vector<1x128xf32>
    %cst_16 = arith.constant 1.600000e+01 : f32
    %13 = vector.broadcast %cst_16 : f32 to vector<1x128xf32>
    %14 = arith.divf %12, %13 : vector<1x128xf32>
    %15 = arith.mulf %0, %0 : vector<16x128xf32>
    %cst_17 = arith.constant dense<0.000000e+00> : vector<128xf32>
    %16 = vector.multi_reduction <add>, %15, %cst_17 [0] : vector<16x128xf32> to vector<128xf32>
    %17 = vector.shape_cast %16 : vector<128xf32> to vector<1x128xf32>
    %cst_18 = arith.constant 1.600000e+01 : f32
    %18 = vector.broadcast %cst_18 : f32 to vector<1x128xf32>
    %19 = arith.divf %17, %18 : vector<1x128xf32>
    %20 = arith.mulf %14, %14 : vector<1x128xf32>
    %21 = arith.subf %19, %20 : vector<1x128xf32>
    %cst_19 = arith.constant 0.000000e+00 : f32
    %22 = vector.broadcast %cst_19 : f32 to vector<1x128xf32>
    %23 = arith.maximumf %21, %22 : vector<1x128xf32>
    %24 = vector.broadcast %14 : vector<1x128xf32> to vector<16x128xf32>
    %25 = arith.subf %0, %24 : vector<16x128xf32>
    %cst_20 = arith.constant 9.99999974E-6 : f32
    %26 = vector.broadcast %cst_20 : f32 to vector<1x128xf32>
    %27 = arith.addf %23, %26 : vector<1x128xf32>
    %28 = math.rsqrt %27 : vector<1x128xf32>
    %29 = vector.broadcast %28 : vector<1x128xf32> to vector<16x128xf32>
    %30 = arith.mulf %25, %29 : vector<16x128xf32>
    %31 = arith.truncf %30 : vector<16x128xf32> to vector<16x128xbf16>
    %cst_21 = arith.constant dense<0.000000e+00> : vector<16x128xf32>
    %32 = tpu.matmul %31, %2, %cst_21 {dimension_numbers = #tpu.dot_dimension_numbers<[1], [0], [0], [1], [0, 0, 1, 1], [], []>} : vector<16x128xbf16>, vector<128x128xbf16>, vector<16x128xf32> -> vector<16x128xf32>
    %cst_22 = arith.constant dense<0.000000e+00> : vector<16x128xf32>
    %33 = tpu.matmul %31, %4, %cst_22 {dimension_numbers = #tpu.dot_dimension_numbers<[1], [0], [0], [1], [0, 0, 1, 1], [], []>} : vector<16x128xbf16>, vector<128x128xbf16>, vector<16x128xf32> -> vector<16x128xf32>
    %34 = arith.truncf %32 : vector<16x128xf32> to vector<16x128xbf16>
    %cst_23 = arith.constant dense<0.000000e+00> : vector<16x16xf32>
    %35 = tpu.matmul %34, %31, %cst_23 {dimension_numbers = #tpu.dot_dimension_numbers<[1], [1], [0], [0], [0, 0, 1, 0], [], []>} : vector<16x128xbf16>, vector<16x128xbf16>, vector<16x16xf32> -> vector<16x16xf32>
    %cst_24 = arith.constant 0.353553385 : f32
    %36 = vector.broadcast %cst_24 : f32 to vector<16x16xf32>
    %37 = arith.mulf %35, %36 : vector<16x16xf32>
    %38 = math.exp %37 : vector<16x16xf32>
    %cst_25 = arith.constant dense<0.000000e+00> : vector<16xf32>
    %39 = vector.multi_reduction <add>, %38, %cst_25 [1] : vector<16x16xf32> to vector<16xf32>
    %40 = vector.shape_cast %39 : vector<16xf32> to vector<16x1xf32>
    %41 = tpu.reciprocal %40 {approx = true} : vector<16x1xf32> -> vector<16x1xf32>
    %42 = vector.broadcast %41 : vector<16x1xf32> to vector<16x16xf32>
    %43 = arith.mulf %38, %42 : vector<16x16xf32>
    %44 = arith.truncf %43 : vector<16x16xf32> to vector<16x16xbf16>
    %45 = arith.truncf %33 : vector<16x128xf32> to vector<16x128xbf16>
    %cst_26 = arith.constant dense<0.000000e+00> : vector<16x128xf32>
    %46 = tpu.matmul %44, %45, %cst_26 {dimension_numbers = #tpu.dot_dimension_numbers<[1], [0], [0], [1], [0, 0, 1, 1], [], []>} : vector<16x16xbf16>, vector<16x128xbf16>, vector<16x128xf32> -> vector<16x128xf32>
    %47 = arith.addf %0, %46 : vector<16x128xf32>
    %cst_27 = arith.constant dense<0.000000e+00> : vector<128xf32>
    %48 = vector.multi_reduction <add>, %47, %cst_27 [0] : vector<16x128xf32> to vector<128xf32>
    %49 = vector.shape_cast %48 : vector<128xf32> to vector<1x128xf32>
    %cst_28 = arith.constant 1.600000e+01 : f32
    %50 = vector.broadcast %cst_28 : f32 to vector<1x128xf32>
    %51 = arith.divf %49, %50 : vector<1x128xf32>
    %52 = arith.mulf %47, %47 : vector<16x128xf32>
    %cst_29 = arith.constant dense<0.000000e+00> : vector<128xf32>
    %53 = vector.multi_reduction <add>, %52, %cst_29 [0] : vector<16x128xf32> to vector<128xf32>
    %54 = vector.shape_cast %53 : vector<128xf32> to vector<1x128xf32>
    %cst_30 = arith.constant 1.600000e+01 : f32
    %55 = vector.broadcast %cst_30 : f32 to vector<1x128xf32>
    %56 = arith.divf %54, %55 : vector<1x128xf32>
    %57 = arith.mulf %51, %51 : vector<1x128xf32>
    %58 = arith.subf %56, %57 : vector<1x128xf32>
    %cst_31 = arith.constant 0.000000e+00 : f32
    %59 = vector.broadcast %cst_31 : f32 to vector<1x128xf32>
    %60 = arith.maximumf %58, %59 : vector<1x128xf32>
    %61 = vector.broadcast %51 : vector<1x128xf32> to vector<16x128xf32>
    %62 = arith.subf %47, %61 : vector<16x128xf32>
    %cst_32 = arith.constant 9.99999974E-6 : f32
    %63 = vector.broadcast %cst_32 : f32 to vector<1x128xf32>
    %64 = arith.addf %60, %63 : vector<1x128xf32>
    %65 = math.rsqrt %64 : vector<1x128xf32>
    %66 = vector.broadcast %65 : vector<1x128xf32> to vector<16x128xf32>
    %67 = arith.mulf %62, %66 : vector<16x128xf32>
    %68 = arith.truncf %67 : vector<16x128xf32> to vector<16x128xbf16>
    %cst_33 = arith.constant dense<0.000000e+00> : vector<16x128xf32>
    %69 = tpu.matmul %68, %6, %cst_33 {dimension_numbers = #tpu.dot_dimension_numbers<[1], [0], [0], [1], [0, 0, 1, 1], [], []>} : vector<16x128xbf16>, vector<128x128xbf16>, vector<16x128xf32> -> vector<16x128xf32>
    %cst_34 = arith.constant dense<0.000000e+00> : vector<128xf32>
    %70 = vector.multi_reduction <add>, %69, %cst_34 [0] : vector<16x128xf32> to vector<128xf32>
    %71 = vector.shape_cast %70 : vector<128xf32> to vector<1x128xf32>
    %cst_35 = arith.constant 1.600000e+01 : f32
    %72 = vector.broadcast %cst_35 : f32 to vector<1x128xf32>
    %73 = arith.divf %71, %72 : vector<1x128xf32>
    %74 = arith.mulf %69, %69 : vector<16x128xf32>
    %cst_36 = arith.constant dense<0.000000e+00> : vector<128xf32>
    %75 = vector.multi_reduction <add>, %74, %cst_36 [0] : vector<16x128xf32> to vector<128xf32>
    %76 = vector.shape_cast %75 : vector<128xf32> to vector<1x128xf32>
    %cst_37 = arith.constant 1.600000e+01 : f32
    %77 = vector.broadcast %cst_37 : f32 to vector<1x128xf32>
    %78 = arith.divf %76, %77 : vector<1x128xf32>
    %79 = arith.mulf %73, %73 : vector<1x128xf32>
    %80 = arith.subf %78, %79 : vector<1x128xf32>
    %cst_38 = arith.constant 0.000000e+00 : f32
    %81 = vector.broadcast %cst_38 : f32 to vector<1x128xf32>
    %82 = arith.maximumf %80, %81 : vector<1x128xf32>
    %83 = vector.broadcast %73 : vector<1x128xf32> to vector<16x128xf32>
    %84 = arith.subf %69, %83 : vector<16x128xf32>
    %cst_39 = arith.constant 9.99999974E-6 : f32
    %85 = vector.broadcast %cst_39 : f32 to vector<1x128xf32>
    %86 = arith.addf %82, %85 : vector<1x128xf32>
    %87 = math.rsqrt %86 : vector<1x128xf32>
    %88 = vector.broadcast %87 : vector<1x128xf32> to vector<16x128xf32>
    %89 = arith.mulf %84, %88 : vector<16x128xf32>
    %cst_40 = arith.constant 5.000000e-01 : f32
    %90 = vector.broadcast %cst_40 : f32 to vector<16x128xf32>
    %91 = arith.mulf %90, %89 : vector<16x128xf32>
    %cst_41 = arith.constant 4.471500e-02 : f32
    %92 = vector.broadcast %cst_41 : f32 to vector<16x128xf32>
    %93 = arith.mulf %92, %89 : vector<16x128xf32>
    %94 = arith.mulf %93, %89 : vector<16x128xf32>
    %95 = arith.mulf %94, %89 : vector<16x128xf32>
    %96 = arith.addf %89, %95 : vector<16x128xf32>
    %cst_42 = arith.constant 0.797884583 : f32
    %97 = vector.broadcast %cst_42 : f32 to vector<16x128xf32>
    %98 = arith.mulf %97, %96 : vector<16x128xf32>
    %99 = math.tanh %98 : vector<16x128xf32>
    %cst_43 = arith.constant 1.000000e+00 : f32
    %100 = vector.broadcast %cst_43 : f32 to vector<16x128xf32>
    %101 = arith.addf %100, %99 : vector<16x128xf32>
    %102 = arith.mulf %91, %101 : vector<16x128xf32>
    %103 = arith.truncf %102 : vector<16x128xf32> to vector<16x128xbf16>
    %cst_44 = arith.constant dense<0.000000e+00> : vector<16x128xf32>
    %104 = tpu.matmul %103, %8, %cst_44 {dimension_numbers = #tpu.dot_dimension_numbers<[1], [0], [0], [1], [0, 0, 1, 1], [], []>} : vector<16x128xbf16>, vector<128x128xbf16>, vector<16x128xf32> -> vector<16x128xf32>
    %105 = vector.broadcast %10 : vector<1x128xf32> to vector<16x128xf32>
    %106 = arith.addf %104, %105 : vector<16x128xf32>
    %107 = arith.addf %47, %106 : vector<16x128xf32>
    %c1 = arith.constant 1 : index
    %c0_45 = arith.constant 0 : index
    %c0_46 = arith.constant 0 : index
    %108 = vector.load %arg1[%c1, %c0_45, %c0_46] : memref<2x128x128xbf16, #tpu.memory_space<vmem>>, vector<1x128x128xbf16>
    %109 = vector.shape_cast %108 : vector<1x128x128xbf16> to vector<128x128xbf16>
    %c1_47 = arith.constant 1 : index
    %c0_48 = arith.constant 0 : index
    %c0_49 = arith.constant 0 : index
    %110 = vector.load %arg2[%c1_47, %c0_48, %c0_49] : memref<2x128x128xbf16, #tpu.memory_space<vmem>>, vector<1x128x128xbf16>
    %111 = vector.shape_cast %110 : vector<1x128x128xbf16> to vector<128x128xbf16>
    %c1_50 = arith.constant 1 : index
    %c0_51 = arith.constant 0 : index
    %c0_52 = arith.constant 0 : index
    %112 = vector.load %arg3[%c1_50, %c0_51, %c0_52] : memref<2x128x128xbf16, #tpu.memory_space<vmem>>, vector<1x128x128xbf16>
    %113 = vector.shape_cast %112 : vector<1x128x128xbf16> to vector<128x128xbf16>
    %c1_53 = arith.constant 1 : index
    %c0_54 = arith.constant 0 : index
    %c0_55 = arith.constant 0 : index
    %114 = vector.load %arg4[%c1_53, %c0_54, %c0_55] : memref<2x128x128xbf16, #tpu.memory_space<vmem>>, vector<1x128x128xbf16>
    %115 = vector.shape_cast %114 : vector<1x128x128xbf16> to vector<128x128xbf16>
    %c1_56 = arith.constant 1 : index
    %c0_57 = arith.constant 0 : index
    %c0_58 = arith.constant 0 : index
    %116 = vector.load %arg5[%c1_56, %c0_57, %c0_58] : memref<2x1x128xf32, #tpu.memory_space<vmem>>, vector<1x1x128xf32>
    %117 = vector.shape_cast %116 : vector<1x1x128xf32> to vector<1x128xf32>
    %cst_59 = arith.constant dense<0.000000e+00> : vector<128xf32>
    %118 = vector.multi_reduction <add>, %107, %cst_59 [0] : vector<16x128xf32> to vector<128xf32>
    %119 = vector.shape_cast %118 : vector<128xf32> to vector<1x128xf32>
    %cst_60 = arith.constant 1.600000e+01 : f32
    %120 = vector.broadcast %cst_60 : f32 to vector<1x128xf32>
    %121 = arith.divf %119, %120 : vector<1x128xf32>
    %122 = arith.mulf %107, %107 : vector<16x128xf32>
    %cst_61 = arith.constant dense<0.000000e+00> : vector<128xf32>
    %123 = vector.multi_reduction <add>, %122, %cst_61 [0] : vector<16x128xf32> to vector<128xf32>
    %124 = vector.shape_cast %123 : vector<128xf32> to vector<1x128xf32>
    %cst_62 = arith.constant 1.600000e+01 : f32
    %125 = vector.broadcast %cst_62 : f32 to vector<1x128xf32>
    %126 = arith.divf %124, %125 : vector<1x128xf32>
    %127 = arith.mulf %121, %121 : vector<1x128xf32>
    %128 = arith.subf %126, %127 : vector<1x128xf32>
    %cst_63 = arith.constant 0.000000e+00 : f32
    %129 = vector.broadcast %cst_63 : f32 to vector<1x128xf32>
    %130 = arith.maximumf %128, %129 : vector<1x128xf32>
    %131 = vector.broadcast %121 : vector<1x128xf32> to vector<16x128xf32>
    %132 = arith.subf %107, %131 : vector<16x128xf32>
    %cst_64 = arith.constant 9.99999974E-6 : f32
    %133 = vector.broadcast %cst_64 : f32 to vector<1x128xf32>
    %134 = arith.addf %130, %133 : vector<1x128xf32>
    %135 = math.rsqrt %134 : vector<1x128xf32>
    %136 = vector.broadcast %135 : vector<1x128xf32> to vector<16x128xf32>
    %137 = arith.mulf %132, %136 : vector<16x128xf32>
    %138 = arith.truncf %137 : vector<16x128xf32> to vector<16x128xbf16>
    %cst_65 = arith.constant dense<0.000000e+00> : vector<16x128xf32>
    %139 = tpu.matmul %138, %109, %cst_65 {dimension_numbers = #tpu.dot_dimension_numbers<[1], [0], [0], [1], [0, 0, 1, 1], [], []>} : vector<16x128xbf16>, vector<128x128xbf16>, vector<16x128xf32> -> vector<16x128xf32>
    %cst_66 = arith.constant dense<0.000000e+00> : vector<16x128xf32>
    %140 = tpu.matmul %138, %111, %cst_66 {dimension_numbers = #tpu.dot_dimension_numbers<[1], [0], [0], [1], [0, 0, 1, 1], [], []>} : vector<16x128xbf16>, vector<128x128xbf16>, vector<16x128xf32> -> vector<16x128xf32>
    %141 = arith.truncf %139 : vector<16x128xf32> to vector<16x128xbf16>
    %cst_67 = arith.constant dense<0.000000e+00> : vector<16x16xf32>
    %142 = tpu.matmul %141, %138, %cst_67 {dimension_numbers = #tpu.dot_dimension_numbers<[1], [1], [0], [0], [0, 0, 1, 0], [], []>} : vector<16x128xbf16>, vector<16x128xbf16>, vector<16x16xf32> -> vector<16x16xf32>
    %cst_68 = arith.constant 0.353553385 : f32
    %143 = vector.broadcast %cst_68 : f32 to vector<16x16xf32>
    %144 = arith.mulf %142, %143 : vector<16x16xf32>
    %145 = math.exp %144 : vector<16x16xf32>
    %cst_69 = arith.constant dense<0.000000e+00> : vector<16xf32>
    %146 = vector.multi_reduction <add>, %145, %cst_69 [1] : vector<16x16xf32> to vector<16xf32>
    %147 = vector.shape_cast %146 : vector<16xf32> to vector<16x1xf32>
    %148 = tpu.reciprocal %147 {approx = true} : vector<16x1xf32> -> vector<16x1xf32>
    %149 = vector.broadcast %148 : vector<16x1xf32> to vector<16x16xf32>
    %150 = arith.mulf %145, %149 : vector<16x16xf32>
    %151 = arith.truncf %150 : vector<16x16xf32> to vector<16x16xbf16>
    %152 = arith.truncf %140 : vector<16x128xf32> to vector<16x128xbf16>
    %cst_70 = arith.constant dense<0.000000e+00> : vector<16x128xf32>
    %153 = tpu.matmul %151, %152, %cst_70 {dimension_numbers = #tpu.dot_dimension_numbers<[1], [0], [0], [1], [0, 0, 1, 1], [], []>} : vector<16x16xbf16>, vector<16x128xbf16>, vector<16x128xf32> -> vector<16x128xf32>
    %154 = arith.addf %107, %153 : vector<16x128xf32>
    %cst_71 = arith.constant dense<0.000000e+00> : vector<128xf32>
    %155 = vector.multi_reduction <add>, %154, %cst_71 [0] : vector<16x128xf32> to vector<128xf32>
    %156 = vector.shape_cast %155 : vector<128xf32> to vector<1x128xf32>
    %cst_72 = arith.constant 1.600000e+01 : f32
    %157 = vector.broadcast %cst_72 : f32 to vector<1x128xf32>
    %158 = arith.divf %156, %157 : vector<1x128xf32>
    %159 = arith.mulf %154, %154 : vector<16x128xf32>
    %cst_73 = arith.constant dense<0.000000e+00> : vector<128xf32>
    %160 = vector.multi_reduction <add>, %159, %cst_73 [0] : vector<16x128xf32> to vector<128xf32>
    %161 = vector.shape_cast %160 : vector<128xf32> to vector<1x128xf32>
    %cst_74 = arith.constant 1.600000e+01 : f32
    %162 = vector.broadcast %cst_74 : f32 to vector<1x128xf32>
    %163 = arith.divf %161, %162 : vector<1x128xf32>
    %164 = arith.mulf %158, %158 : vector<1x128xf32>
    %165 = arith.subf %163, %164 : vector<1x128xf32>
    %cst_75 = arith.constant 0.000000e+00 : f32
    %166 = vector.broadcast %cst_75 : f32 to vector<1x128xf32>
    %167 = arith.maximumf %165, %166 : vector<1x128xf32>
    %168 = vector.broadcast %158 : vector<1x128xf32> to vector<16x128xf32>
    %169 = arith.subf %154, %168 : vector<16x128xf32>
    %cst_76 = arith.constant 9.99999974E-6 : f32
    %170 = vector.broadcast %cst_76 : f32 to vector<1x128xf32>
    %171 = arith.addf %167, %170 : vector<1x128xf32>
    %172 = math.rsqrt %171 : vector<1x128xf32>
    %173 = vector.broadcast %172 : vector<1x128xf32> to vector<16x128xf32>
    %174 = arith.mulf %169, %173 : vector<16x128xf32>
    %175 = arith.truncf %174 : vector<16x128xf32> to vector<16x128xbf16>
    %cst_77 = arith.constant dense<0.000000e+00> : vector<16x128xf32>
    %176 = tpu.matmul %175, %113, %cst_77 {dimension_numbers = #tpu.dot_dimension_numbers<[1], [0], [0], [1], [0, 0, 1, 1], [], []>} : vector<16x128xbf16>, vector<128x128xbf16>, vector<16x128xf32> -> vector<16x128xf32>
    %cst_78 = arith.constant dense<0.000000e+00> : vector<128xf32>
    %177 = vector.multi_reduction <add>, %176, %cst_78 [0] : vector<16x128xf32> to vector<128xf32>
    %178 = vector.shape_cast %177 : vector<128xf32> to vector<1x128xf32>
    %cst_79 = arith.constant 1.600000e+01 : f32
    %179 = vector.broadcast %cst_79 : f32 to vector<1x128xf32>
    %180 = arith.divf %178, %179 : vector<1x128xf32>
    %181 = arith.mulf %176, %176 : vector<16x128xf32>
    %cst_80 = arith.constant dense<0.000000e+00> : vector<128xf32>
    %182 = vector.multi_reduction <add>, %181, %cst_80 [0] : vector<16x128xf32> to vector<128xf32>
    %183 = vector.shape_cast %182 : vector<128xf32> to vector<1x128xf32>
    %cst_81 = arith.constant 1.600000e+01 : f32
    %184 = vector.broadcast %cst_81 : f32 to vector<1x128xf32>
    %185 = arith.divf %183, %184 : vector<1x128xf32>
    %186 = arith.mulf %180, %180 : vector<1x128xf32>
    %187 = arith.subf %185, %186 : vector<1x128xf32>
    %cst_82 = arith.constant 0.000000e+00 : f32
    %188 = vector.broadcast %cst_82 : f32 to vector<1x128xf32>
    %189 = arith.maximumf %187, %188 : vector<1x128xf32>
    %190 = vector.broadcast %180 : vector<1x128xf32> to vector<16x128xf32>
    %191 = arith.subf %176, %190 : vector<16x128xf32>
    %cst_83 = arith.constant 9.99999974E-6 : f32
    %192 = vector.broadcast %cst_83 : f32 to vector<1x128xf32>
    %193 = arith.addf %189, %192 : vector<1x128xf32>
    %194 = math.rsqrt %193 : vector<1x128xf32>
    %195 = vector.broadcast %194 : vector<1x128xf32> to vector<16x128xf32>
    %196 = arith.mulf %191, %195 : vector<16x128xf32>
    %cst_84 = arith.constant 5.000000e-01 : f32
    %197 = vector.broadcast %cst_84 : f32 to vector<16x128xf32>
    %198 = arith.mulf %197, %196 : vector<16x128xf32>
    %cst_85 = arith.constant 4.471500e-02 : f32
    %199 = vector.broadcast %cst_85 : f32 to vector<16x128xf32>
    %200 = arith.mulf %199, %196 : vector<16x128xf32>
    %201 = arith.mulf %200, %196 : vector<16x128xf32>
    %202 = arith.mulf %201, %196 : vector<16x128xf32>
    %203 = arith.addf %196, %202 : vector<16x128xf32>
    %cst_86 = arith.constant 0.797884583 : f32
    %204 = vector.broadcast %cst_86 : f32 to vector<16x128xf32>
    %205 = arith.mulf %204, %203 : vector<16x128xf32>
    %206 = math.tanh %205 : vector<16x128xf32>
    %cst_87 = arith.constant 1.000000e+00 : f32
    %207 = vector.broadcast %cst_87 : f32 to vector<16x128xf32>
    %208 = arith.addf %207, %206 : vector<16x128xf32>
    %209 = arith.mulf %198, %208 : vector<16x128xf32>
    %210 = arith.truncf %209 : vector<16x128xf32> to vector<16x128xbf16>
    %cst_88 = arith.constant dense<0.000000e+00> : vector<16x128xf32>
    %211 = tpu.matmul %210, %115, %cst_88 {dimension_numbers = #tpu.dot_dimension_numbers<[1], [0], [0], [1], [0, 0, 1, 1], [], []>} : vector<16x128xbf16>, vector<128x128xbf16>, vector<16x128xf32> -> vector<16x128xf32>
    %212 = vector.broadcast %117 : vector<1x128xf32> to vector<16x128xf32>
    %213 = arith.addf %211, %212 : vector<16x128xf32>
    %214 = arith.addf %154, %213 : vector<16x128xf32>
    %c0_89 = arith.constant 0 : index
    %c0_90 = arith.constant 0 : index
    %215 = vector.load %arg6[%c0_89, %c0_90] : memref<16x128xf32, #tpu.memory_space<vmem>>, vector<16x128xf32>
    tpu.vector_store %arg6[%c0_89, %c0_90], %214 {strides = array<i32>} : memref<16x128xf32, #tpu.memory_space<vmem>>, vector<16x128xf32>,
    return
  }
}

</mosaic_0001>

<llo_original>
// kernel: transformer_forward.1
$region0: #{transformer_forward.1}
  #allocation0 [shape = 'u32[]', space=smem, size = 0x4, offset = 0x4, fixed_abs, tag = 'smem constant byte address 0x4 - core index']
  #allocation1 [shape = 'u32[144,128]{1,0:T(1,128)}', space=vmem, size = 0x12000, scoped, tag = 'internal scratch']
  %s0 = inlined_call_operand.vmem [shape: f32[16,128], index: 0, kind: input, shape index: {}]
  %s1 = inlined_call_operand.vmem [shape: bf16[2,128,128], index: 1, kind: input, shape index: {}]
  %s2 = inlined_call_operand.vmem [shape: bf16[2,128,128], index: 2, kind: input, shape index: {}]
  %s3 = inlined_call_operand.vmem [shape: bf16[2,128,128], index: 3, kind: input, shape index: {}]
  %s4 = inlined_call_operand.vmem [shape: bf16[2,128,128], index: 4, kind: input, shape index: {}]
  %s5 = inlined_call_operand.vmem [shape: f32[2,1,128], index: 5, kind: input, shape index: {}]
  %s6 = inlined_call_operand.vmem [shape: f32[16,128], index: 6, kind: output, shape index: {}]
  %s7 = sld [smem:[#allocation0]]
  $region34: #{transformer_forward.1} parent=0
    _
  %s9 = ssub.s32 1, %s7
  %s10 = scalar_select 0, %s9, %s7
  // Predicated region
  $region2: #{transformer_forward.1} parent=0 // pred_check
    _
  $region3: #{transformer_forward.1} parent=0 // pred_check_branch
    %12 = sbr.rel (0) target = $region5
  $region4: #{transformer_forward.1} parent=0 // pred_region
    _
  $region5: #{transformer_forward.1} parent=0 // pred_fallthru
    _
  // Predicated region
  $region6: #{transformer_forward.1} parent=0 // pred_check
    _
  $region7: #{transformer_forward.1} parent=0 // pred_check_branch
    %14 = sbr.rel (0) target = $region9
  $region8: #{transformer_forward.1} parent=0 // pred_region
    _
  $region9: #{transformer_forward.1} parent=0 // pred_fallthru
    _
  // Predicated region
  $region10: #{transformer_forward.1} parent=0 // pred_check
    _
  $region11: #{transformer_forward.1} parent=0 // pred_check_branch
    %16 = sbr.rel (0) target = $region13
  $region12: #{transformer_forward.1} parent=0 // pred_region
    _
  $region13: #{transformer_forward.1} parent=0 // pred_fallthru
    _
  // Predicated region
  $region14: #{transformer_forward.1} parent=0 // pred_check
    _
  $region15: #{transformer_forward.1} parent=0 // pred_check_branch
    %18 = sbr.rel (0) target = $region17
  $region16: #{transformer_forward.1} parent=0 // pred_region
    _
  $region17: #{transformer_forward.1} parent=0 // pred_fallthru
    _
  // Predicated region
  $region18: #{transformer_forward.1} parent=0 // pred_check
    _
  $region19: #{transformer_forward.1} parent=0 // pred_check_branch
    %20 = sbr.rel (0) target = $region21
  $region20: #{transformer_forward.1} parent=0 // pred_region
    _
  $region21: #{transformer_forward.1} parent=0 // pred_fallthru
    _
  // Predicated region
  $region22: #{transformer_forward.1} parent=0 // pred_check
    _
  $region23: #{transformer_forward.1} parent=0 // pred_check_branch
    %22 = sbr.rel (0) target = $region25
  $region24: #{transformer_forward.1} parent=0 // pred_region
    _
  $region25: #{transformer_forward.1} parent=0 // pred_fallthru
    _
  %v24 = vld [vmem:[%s0] sm:$0xff]
  %v25 = vld [vmem:[%s0 + $0x8] sm:$0xff]
  %v26 = vld [vmem:[%s1] sm:$0xf]
  %v27 = vld [vmem:[%s1 + $0x4] sm:$0xf]
  %v28 = vld [vmem:[%s1 + $0x8] sm:$0xf]
  %v29 = vld [vmem:[%s1 + $0xc] sm:$0xf]
  %v30 = vld [vmem:[%s1 + $0x10] sm:$0xf]
  %v31 = vld [vmem:[%s1 + $0x14] sm:$0xf]
  %v32 = vld [vmem:[%s1 + $0x18] sm:$0xf]
  %v33 = vld [vmem:[%s1 + $0x1c] sm:$0xf]
  %v34 = vld [vmem:[%s1 + $0x20] sm:$0xf]
  %v35 = vld [vmem:[%s1 + $0x24] sm:$0xf]
  %v36 = vld [vmem:[%s1 + $0x28] sm:$0xf]
  %v37 = vld [vmem:[%s1 + $0x2c] sm:$0xf]
  %v38 = vld [vmem:[%s1 + $0x30] sm:$0xf]
  %v39 = vld [vmem:[%s1 + $0x34] sm:$0xf]
  %v40 = vld [vmem:[%s1 + $0x38] sm:$0xf]
  %v41 = vld [vmem:[%s1 + $0x3c] sm:$0xf]
  %v42 = vld [vmem:[%s2] sm:$0xf]
  %v43 = vld [vmem:[%s2 + $0x4] sm:$0xf]
  %v44 = vld [vmem:[%s2 + $0x8] sm:$0xf]
  %v45 = vld [vmem:[%s2 + $0xc] sm:$0xf]
  %v46 = vld [vmem:[%s2 + $0x10] sm:$0xf]
  %v47 = vld [vmem:[%s2 + $0x14] sm:$0xf]
  %v48 = vld [vmem:[%s2 + $0x18] sm:$0xf]
  %v49 = vld [vmem:[%s2 + $0x1c] sm:$0xf]
  %v50 = vld [vmem:[%s2 + $0x20] sm:$0xf]
  %v51 = vld [vmem:[%s2 + $0x24] sm:$0xf]
  %v52 = vld [vmem:[%s2 + $0x28] sm:$0xf]
  %v53 = vld [vmem:[%s2 + $0x2c] sm:$0xf]
  %v54 = vld [vmem:[%s2 + $0x30] sm:$0xf]
  %v55 = vld [vmem:[%s2 + $0x34] sm:$0xf]
  %v56 = vld [vmem:[%s2 + $0x38] sm:$0xf]
  %v57 = vld [vmem:[%s2 + $0x3c] sm:$0xf]
  %v58 = vld [vmem:[%s3] sm:$0xf]
  %v59 = vld [vmem:[%s3 + $0x4] sm:$0xf]
  %v60 = vld [vmem:[%s3 + $0x8] sm:$0xf]
  %v61 = vld [vmem:[%s3 + $0xc] sm:$0xf]
  %v62 = vld [vmem:[%s3 + $0x10] sm:$0xf]
  %v63 = vld [vmem:[%s3 + $0x14] sm:$0xf]
  %v64 = vld [vmem:[%s3 + $0x18] sm:$0xf]
  %v65 = vld [vmem:[%s3 + $0x1c] sm:$0xf]
  %v66 = vld [vmem:[%s3 + $0x20] sm:$0xf]
  %v67 = vld [vmem:[%s3 + $0x24] sm:$0xf]
  %v68 = vld [vmem:[%s3 + $0x28] sm:$0xf]
  %v69 = vld [vmem:[%s3 + $0x2c] sm:$0xf]
  %v70 = vld [vmem:[%s3 + $0x30] sm:$0xf]
  %v71 = vld [vmem:[%s3 + $0x34] sm:$0xf]
  %v72 = vld [vmem:[%s3 + $0x38] sm:$0xf]
  %v73 = vld [vmem:[%s3 + $0x3c] sm:$0xf]
  %v74 = vld [vmem:[%s4] sm:$0xf]
  %v75 = vld [vmem:[%s4 + $0x4] sm:$0xf]
  %v76 = vld [vmem:[%s4 + $0x8] sm:$0xf]
  %v77 = vld [vmem:[%s4 + $0xc] sm:$0xf]
  %v78 = vld [vmem:[%s4 + $0x10] sm:$0xf]
  %v79 = vld [vmem:[%s4 + $0x14] sm:$0xf]
  %v80 = vld [vmem:[%s4 + $0x18] sm:$0xf]
  %v81 = vld [vmem:[%s4 + $0x1c] sm:$0xf]
  %v82 = vld [vmem:[%s4 + $0x20] sm:$0xf]
  %v83 = vld [vmem:[%s4 + $0x24] sm:$0xf]
  %v84 = vld [vmem:[%s4 + $0x28] sm:$0xf]
  %v85 = vld [vmem:[%s4 + $0x2c] sm:$0xf]
  %v86 = vld [vmem:[%s4 + $0x30] sm:$0xf]
  %v87 = vld [vmem:[%s4 + $0x34] sm:$0xf]
  %v88 = vld [vmem:[%s4 + $0x38] sm:$0xf]
  %v89 = vld [vmem:[%s4 + $0x3c] sm:$0xf]
  %v90 = vld [vmem:[%s5] sm:$0x1]
  %v91 = vadd.f32 %v24, %v25
  %v92 = vrot.slane %v91, 4
  %v93 = vadd.f32 %v91, %v92
  %v94 = vrot.slane %v93, 2
  %v95 = vadd.f32 %v93, %v94
  %v96 = vrot.slane %v95, 1
  %v97 = vadd.f32 %v95, %v96
  %v98 = vrcp.pop 16.0
  %v99 = vmul.f32 %v97, %v98
  %v100 = vmul.f32 %v24, %v24
  %v101 = vmul.f32 %v25, %v25
  %v102 = vadd.f32 %v100, %v101
  %v103 = vrot.slane %v102, 4
  %v104 = vadd.f32 %v102, %v103
  %v105 = vrot.slane %v104, 2
  %v106 = vadd.f32 %v104, %v105
  %v107 = vrot.slane %v106, 1
  %v108 = vadd.f32 %v106, %v107
  %v109 = vmul.f32 %v108, %v98
  %v110 = vmul.f32 %v99, %v99
  %v111 = vsub.f32 %v109, %v110
  %v112 = vmax.f32 %v111, 0.0
  %v113 = vsub.f32 %v24, %v99
  %v114 = vsub.f32 %v25, %v99
  %v115 = vadd.f32 %v112, 1e-05
  %v116 = vrsqrt.pop %v115
  %v117 = vmul.f32 %v113, %v116
  %v118 = vmul.f32 %v114, %v116
  %v119 = vpack.c.bf16 %v118, %v117
  %v136 = vunpack.c.l.b16 %v26
  %v137 = vunpack.c.l.b16 %v27
  %v138 = vunpack.c.l.b16 %v28
  %v139 = vunpack.c.l.b16 %v29
  %v140 = vunpack.c.l.b16 %v30
  %v141 = vunpack.c.l.b16 %v31
  %v142 = vunpack.c.l.b16 %v32
  %v143 = vunpack.c.l.b16 %v33
  %v144 = vunpack.c.l.b16 %v34
  %v145 = vunpack.c.l.b16 %v35
  %v146 = vunpack.c.l.b16 %v36
  %v147 = vunpack.c.l.b16 %v37
  %v148 = vunpack.c.l.b16 %v38
  %v149 = vunpack.c.l.b16 %v39
  %v150 = vunpack.c.l.b16 %v40
  %v151 = vunpack.c.l.b16 %v41
  %v152 = vpack.c.b16 %v137, %v136
  %v153 = vpack.c.b16 %v139, %v138
  %v154 = vpack.c.b16 %v141, %v140
  %v155 = vpack.c.b16 %v143, %v142
  %v156 = vpack.c.b16 %v145, %v144
  %v157 = vpack.c.b16 %v147, %v146
  %v158 = vpack.c.b16 %v149, %v148
  %v159 = vpack.c.b16 %v151, %v150
  %168 = vmatprep.subr.bf16.mxu0 0
  %169 = vmatpush1.bf16.msra.mxu0 %v159
  %170 = vmatprep.subr.bf16.mxu0 0
  %171 = vmatpush1.bf16.msra.mxu0 %v158
  %172 = vmatprep.subr.bf16.mxu0 0
  %173 = vmatpush1.bf16.msra.mxu0 %v157
  %174 = vmatprep.subr.bf16.mxu0 0
  %175 = vmatpush1.bf16.msra.mxu0 %v156
  %176 = vmatprep.subr.bf16.mxu0 0
  %177 = vmatpush1.bf16.msra.mxu0 %v155
  %178 = vmatprep.subr.bf16.mxu0 0
  %179 = vmatpush1.bf16.msra.mxu0 %v154
  %180 = vmatprep.subr.bf16.mxu0 0
  %181 = vmatpush1.bf16.msra.mxu0 %v153
  %182 = vmatprep.subr.bf16.mxu0 0
  %183 = vmatpush1.bf16.msra.mxu0 %v152
  %184 = vmatprep.subr.bf16.mxu0 0
  %185 = vmatpush2.bf16.msra.mxu0 0
  %186 = vmatprep.subr.bf16.mxu0 0
  %187 = vmatpush2.bf16.msra.mxu0 0
  %188 = vmatprep.subr.bf16.mxu0 0
  %189 = vmatpush2.bf16.msra.mxu0 0
  %190 = vmatprep.subr.bf16.mxu0 0
  %191 = vmatpush2.bf16.msra.mxu0 0
  %192 = vmatprep.subr.bf16.mxu0 0
  %193 = vmatpush2.bf16.msra.mxu0 0
  %194 = vmatprep.subr.bf16.mxu0 0
  %195 = vmatpush2.bf16.msra.mxu0 0
  %196 = vmatprep.subr.bf16.mxu0 0
  %197 = vmatpush2.bf16.msra.mxu0 0
  %198 = vmatprep.subr.bf16.mxu0 0
  %199 = vmatpush2.bf16.msra.mxu0 0
  %200 = vmatprep.mubr.bf16.mxu0 0
  %201 = vmatmul.mubr.bf16.gmra.mxu0 %v119
  %v202 = vpop.f32.mrf.mxu0
  %v203 = vadd.f32 0.0, %v202
  %v204 = vpop.f32.mrf.mxu0
  %v205 = vpop.f32.mrf.mxu0
  %v206 = vadd.f32 0.0, %v205
  %v207 = vpop.f32.mrf.mxu0
  %208 = vdwg.mxu0
  %v225 = vunpack.c.l.b16 %v42
  %v226 = vunpack.c.l.b16 %v43
  %v227 = vunpack.c.l.b16 %v44
  %v228 = vunpack.c.l.b16 %v45
  %v229 = vunpack.c.l.b16 %v46
  %v230 = vunpack.c.l.b16 %v47
  %v231 = vunpack.c.l.b16 %v48
  %v232 = vunpack.c.l.b16 %v49
  %v233 = vunpack.c.l.b16 %v50
  %v234 = vunpack.c.l.b16 %v51
  %v235 = vunpack.c.l.b16 %v52
  %v236 = vunpack.c.l.b16 %v53
  %v237 = vunpack.c.l.b16 %v54
  %v238 = vunpack.c.l.b16 %v55
  %v239 = vunpack.c.l.b16 %v56
  %v240 = vunpack.c.l.b16 %v57
  %v241 = vpack.c.b16 %v226, %v225
  %v242 = vpack.c.b16 %v228, %v227
  %v243 = vpack.c.b16 %v230, %v229
  %v244 = vpack.c.b16 %v232, %v231
  %v245 = vpack.c.b16 %v234, %v233
  %v246 = vpack.c.b16 %v236, %v235
  %v247 = vpack.c.b16 %v238, %v237
  %v248 = vpack.c.b16 %v240, %v239
  %257 = vmatprep.subr.bf16.mxu0 0
  %258 = vmatpush1.bf16.msra.mxu0 %v248
  %259 = vmatprep.subr.bf16.mxu0 0
  %260 = vmatpush1.bf16.msra.mxu0 %v247
  %261 = vmatprep.subr.bf16.mxu0 0
  %262 = vmatpush1.bf16.msra.mxu0 %v246
  %263 = vmatprep.subr.bf16.mxu0 0
  %264 = vmatpush1.bf16.msra.mxu0 %v245
  %265 = vmatprep.subr.bf16.mxu0 0
  %266 = vmatpush1.bf16.msra.mxu0 %v244
  %267 = vmatprep.subr.bf16.mxu0 0
  %268 = vmatpush1.bf16.msra.mxu0 %v243
  %269 = vmatprep.subr.bf16.mxu0 0
  %270 = vmatpush1.bf16.msra.mxu0 %v242
  %271 = vmatprep.subr.bf16.mxu0 0
  %272 = vmatpush1.bf16.msra.mxu0 %v241
  %273 = vmatprep.subr.bf16.mxu0 0
  %274 = vmatpush2.bf16.msra.mxu0 0
  %275 = vmatprep.subr.bf16.mxu0 0
  %276 = vmatpush2.bf16.msra.mxu0 0
  %277 = vmatprep.subr.bf16.mxu0 0
  %278 = vmatpush2.bf16.msra.mxu0 0
  %279 = vmatprep.subr.bf16.mxu0 0
  %280 = vmatpush2.bf16.msra.mxu0 0
  %281 = vmatprep.subr.bf16.mxu0 0
  %282 = vmatpush2.bf16.msra.mxu0 0
  %283 = vmatprep.subr.bf16.mxu0 0
  %284 = vmatpush2.bf16.msra.mxu0 0
  %285 = vmatprep.subr.bf16.mxu0 0
  %286 = vmatpush2.bf16.msra.mxu0 0
  %287 = vmatprep.subr.bf16.mxu0 0
  %288 = vmatpush2.bf16.msra.mxu0 0
  %289 = vmatprep.mubr.bf16.mxu0 0
  %290 = vmatmul.mubr.bf16.gmra.mxu0 %v119
  %v291 = vpop.f32.mrf.mxu0
  %v292 = vadd.f32 0.0, %v291
  %v293 = vpop.f32.mrf.mxu0
  %v294 = vpop.f32.mrf.mxu0
  %v295 = vadd.f32 0.0, %v294
  %v296 = vpop.f32.mrf.mxu0
  %297 = vdwg.mxu0
  %v298 = vpack.c.bf16 %v206, %v203
  %299 = vmatprep.subr.bf16.mxu0 0
  %300 = vmatpush1.bf16.xpose.msra.mxu0 0
  %301 = vmatprep.subr.bf16.mxu0 0
  %302 = vmatpush1.bf16.xpose.msra.mxu0 0
  %303 = vmatprep.subr.bf16.mxu0 0
  %304 = vmatpush1.bf16.xpose.msra.mxu0 0
  %305 = vmatprep.subr.bf16.mxu0 0
  %306 = vmatpush1.bf16.xpose.msra.mxu0 0
  %307 = vmatprep.subr.bf16.mxu0 0
  %308 = vmatpush1.bf16.xpose.msra.mxu0 0
  %309 = vmatprep.subr.bf16.mxu0 0
  %310 = vmatpush1.bf16.xpose.msra.mxu0 0
  %311 = vmatprep.subr.bf16.mxu0 0
  %312 = vmatpush1.bf16.xpose.msra.mxu0 0
  %313 = vmatprep.subr.bf16.mxu0 0
  %314 = vmatpush1.bf16.xpose.msra.mxu0 %v119
  %315 = vmatprep.subr.bf16.mxu0 0
  %316 = vmatpush2.bf16.xpose.msra.mxu0 0
  %317 = vmatprep.subr.bf16.mxu0 0
  %318 = vmatpush2.bf16.xpose.msra.mxu0 0
  %319 = vmatprep.subr.bf16.mxu0 0
  %320 = vmatpush2.bf16.xpose.msra.mxu0 0
  %321 = vmatprep.subr.bf16.mxu0 0
  %322 = vmatpush2.bf16.xpose.msra.mxu0 0
  %323 = vmatprep.subr.bf16.mxu0 0
  %324 = vmatpush2.bf16.xpose.msra.mxu0 0
  %325 = vmatprep.subr.bf16.mxu0 0
  %326 = vmatpush2.bf16.xpose.msra.mxu0 0
  %327 = vmatprep.subr.bf16.mxu0 0
  %328 = vmatpush2.bf16.xpose.msra.mxu0 0
  %329 = vmatprep.subr.bf16.mxu0 0
  %330 = vmatpush2.bf16.xpose.msra.mxu0 0
  %331 = vmatprep.mubr.bf16.mxu0 0
  %332 = vmatmul.mubr.bf16.gmra.mxu0 %v298
  %v333 = vpop.f32.mrf.mxu0
  %v334 = vadd.f32 0.0, %v333
  %v335 = vpop.f32.mrf.mxu0
  %v336 = vpop.f32.mrf.mxu0
  %v337 = vadd.f32 0.0, %v336
  %v338 = vpop.f32.mrf.mxu0
  %339 = vdwg.mxu0
  %v340 = vmul.f32 %v334, 0.35355338
  %v341 = vmul.f32 %v337, 0.35355338
  %v342 = vmul.f32 %v340, 1.442695
  %v343 = vpow.pop %v342
  %v344 = vmul.f32 %v341, 1.442695
  %v345 = vpow.pop %v344
  %vm346 = vcmask 130048
  %v347 = vsel %vm346, %v343, 0.0
  %348 = vadd.xlane.f32.xlu0 %v347
  %v349 = vpop.xlane.xlu0 %348
  %v350 = vsel %vm346, %v345, 0.0
  %351 = vadd.xlane.f32.xlu0 %v350
  %v352 = vpop.xlane.xlu0 %351
  %v353 = vrcp.pop %v349
  %v354 = vrcp.pop %v352
  %v355 = vmul.f32 %v343, %v353
  %v356 = vmul.f32 %v345, %v354
  %v357 = vpack.c.bf16 %v356, %v355
  %v358 = vpack.c.bf16 %v295, %v292
  %v360 = vsel %vm346, %v357, 0
  %362 = vmatprep.subr.bf16.mxu0 0
  %363 = vmatpush1.bf16.msra.mxu0 0
  %364 = vmatprep.subr.bf16.mxu0 0
  %365 = vmatpush1.bf16.msra.mxu0 0
  %366 = vmatprep.subr.bf16.mxu0 0
  %367 = vmatpush1.bf16.msra.mxu0 0
  %368 = vmatprep.subr.bf16.mxu0 0
  %369 = vmatpush1.bf16.msra.mxu0 0
  %370 = vmatprep.subr.bf16.mxu0 0
  %371 = vmatpush1.bf16.msra.mxu0 0
  %372 = vmatprep.subr.bf16.mxu0 0
  %373 = vmatpush1.bf16.msra.mxu0 0
  %374 = vmatprep.subr.bf16.mxu0 0
  %375 = vmatpush1.bf16.msra.mxu0 0
  %376 = vmatprep.subr.bf16.mxu0 0
  %377 = vmatpush1.bf16.msra.mxu0 %v358
  %378 = vmatprep.subr.bf16.mxu0 0
  %379 = vmatpush2.bf16.msra.mxu0 0
  %380 = vmatprep.subr.bf16.mxu0 0
  %381 = vmatpush2.bf16.msra.mxu0 0
  %382 = vmatprep.subr.bf16.mxu0 0
  %383 = vmatpush2.bf16.msra.mxu0 0
  %384 = vmatprep.subr.bf16.mxu0 0
  %385 = vmatpush2.bf16.msra.mxu0 0
  %386 = vmatprep.subr.bf16.mxu0 0
  %387 = vmatpush2.bf16.msra.mxu0 0
  %388 = vmatprep.subr.bf16.mxu0 0
  %389 = vmatpush2.bf16.msra.mxu0 0
  %390 = vmatprep.subr.bf16.mxu0 0
  %391 = vmatpush2.bf16.msra.mxu0 0
  %392 = vmatprep.subr.bf16.mxu0 0
  %393 = vmatpush2.bf16.msra.mxu0 0
  %394 = vmatprep.mubr.bf16.mxu0 0
  %395 = vmatmul.mubr.bf16.gmra.mxu0 %v360
  %v396 = vpop.f32.mrf.mxu0
  %v397 = vadd.f32 0.0, %v396
  %v398 = vpop.f32.mrf.mxu0
  %v399 = vpop.f32.mrf.mxu0
  %v400 = vadd.f32 0.0, %v399
  %v401 = vpop.f32.mrf.mxu0
  %402 = vdwg.mxu0
  %v403 = vadd.f32 %v24, %v397
  %v404 = vadd.f32 %v25, %v400
  %v405 = vadd.f32 %v403, %v404
  %v406 = vrot.slane %v405, 4
  %v407 = vadd.f32 %v405, %v406
  %v408 = vrot.slane %v407, 2
  %v409 = vadd.f32 %v407, %v408
  %v410 = vrot.slane %v409, 1
  %v411 = vadd.f32 %v409, %v410
  %v412 = vmul.f32 %v411, %v98
  %v413 = vmul.f32 %v403, %v403
  %v414 = vmul.f32 %v404, %v404
  %v415 = vadd.f32 %v413, %v414
  %v416 = vrot.slane %v415, 4
  %v417 = vadd.f32 %v415, %v416
  %v418 = vrot.slane %v417, 2
  %v419 = vadd.f32 %v417, %v418
  %v420 = vrot.slane %v419, 1
  %v421 = vadd.f32 %v419, %v420
  %v422 = vmul.f32 %v421, %v98
  %v423 = vmul.f32 %v412, %v412
  %v424 = vsub.f32 %v422, %v423
  %v425 = vmax.f32 %v424, 0.0
  %v426 = vsub.f32 %v403, %v412
  %v427 = vsub.f32 %v404, %v412
  %v428 = vadd.f32 %v425, 1e-05
  %v429 = vrsqrt.pop %v428
  %v430 = vmul.f32 %v426, %v429
  %v431 = vmul.f32 %v427, %v429
  %v432 = vpack.c.bf16 %v431, %v430
  %v449 = vunpack.c.l.b16 %v58
  %v450 = vunpack.c.l.b16 %v59
  %v451 = vunpack.c.l.b16 %v60
  %v452 = vunpack.c.l.b16 %v61
  %v453 = vunpack.c.l.b16 %v62
  %v454 = vunpack.c.l.b16 %v63
  %v455 = vunpack.c.l.b16 %v64
  %v456 = vunpack.c.l.b16 %v65
  %v457 = vunpack.c.l.b16 %v66
  %v458 = vunpack.c.l.b16 %v67
  %v459 = vunpack.c.l.b16 %v68
  %v460 = vunpack.c.l.b16 %v69
  %v461 = vunpack.c.l.b16 %v70
  %v462 = vunpack.c.l.b16 %v71
  %v463 = vunpack.c.l.b16 %v72
  %v464 = vunpack.c.l.b16 %v73
  %v465 = vpack.c.b16 %v450, %v449
  %v466 = vpack.c.b16 %v452, %v451
  %v467 = vpack.c.b16 %v454, %v453
  %v468 = vpack.c.b16 %v456, %v455
  %v469 = vpack.c.b16 %v458, %v457
  %v470 = vpack.c.b16 %v460, %v459
  %v471 = vpack.c.b16 %v462, %v461
  %v472 = vpack.c.b16 %v464, %v463
  %481 = vmatprep.subr.bf16.mxu0 0
  %482 = vmatpush1.bf16.msra.mxu0 %v472
  %483 = vmatprep.subr.bf16.mxu0 0
  %484 = vmatpush1.bf16.msra.mxu0 %v471
  %485 = vmatprep.subr.bf16.mxu0 0
  %486 = vmatpush1.bf16.msra.mxu0 %v470
  %487 = vmatprep.subr.bf16.mxu0 0
  %488 = vmatpush1.bf16.msra.mxu0 %v469
  %489 = vmatprep.subr.bf16.mxu0 0
  %490 = vmatpush1.bf16.msra.mxu0 %v468
  %491 = vmatprep.subr.bf16.mxu0 0
  %492 = vmatpush1.bf16.msra.mxu0 %v467
  %493 = vmatprep.subr.bf16.mxu0 0
  %494 = vmatpush1.bf16.msra.mxu0 %v466
  %495 = vmatprep.subr.bf16.mxu0 0
  %496 = vmatpush1.bf16.msra.mxu0 %v465
  %497 = vmatprep.subr.bf16.mxu0 0
  %498 = vmatpush2.bf16.msra.mxu0 0
  %499 = vmatprep.subr.bf16.mxu0 0
  %500 = vmatpush2.bf16.msra.mxu0 0
  %501 = vmatprep.subr.bf16.mxu0 0
  %502 = vmatpush2.bf16.msra.mxu0 0
  %503 = vmatprep.subr.bf16.mxu0 0
  %504 = vmatpush2.bf16.msra.mxu0 0
  %505 = vmatprep.subr.bf16.mxu0 0
  %506 = vmatpush2.bf16.msra.mxu0 0
  %507 = vmatprep.subr.bf16.mxu0 0
  %508 = vmatpush2.bf16.msra.mxu0 0
  %509 = vmatprep.subr.bf16.mxu0 0
  %510 = vmatpush2.bf16.msra.mxu0 0
  %511 = vmatprep.subr.bf16.mxu0 0
  %512 = vmatpush2.bf16.msra.mxu0 0
  %513 = vmatprep.mubr.bf16.mxu0 0
  %514 = vmatmul.mubr.bf16.gmra.mxu0 %v432
  %v515 = vpop.f32.mrf.mxu0
  %v516 = vadd.f32 0.0, %v515
  %v517 = vpop.f32.mrf.mxu0
  %v518 = vpop.f32.mrf.mxu0
  %v519 = vadd.f32 0.0, %v518
  %v520 = vpop.f32.mrf.mxu0
  %521 = vdwg.mxu0
  %v522 = vadd.f32 %v516, %v519
  %v523 = vrot.slane %v522, 4
  %v524 = vadd.f32 %v522, %v523
  %v525 = vrot.slane %v524, 2
  %v526 = vadd.f32 %v524, %v525
  %v527 = vrot.slane %v526, 1
  %v528 = vadd.f32 %v526, %v527
  %v529 = vmul.f32 %v528, %v98
  %v530 = vmul.f32 %v516, %v516
  %v531 = vmul.f32 %v519, %v519
  %v532 = vadd.f32 %v530, %v531
  %v533 = vrot.slane %v532, 4
  %v534 = vadd.f32 %v532, %v533
  %v535 = vrot.slane %v534, 2
  %v536 = vadd.f32 %v534, %v535
  %v537 = vrot.slane %v536, 1
  %v538 = vadd.f32 %v536, %v537
  %v539 = vmul.f32 %v538, %v98
  %v540 = vmul.f32 %v529, %v529
  %v541 = vsub.f32 %v539, %v540
  %v542 = vmax.f32 %v541, 0.0
  %v543 = vsub.f32 %v516, %v529
  %v544 = vsub.f32 %v519, %v529
  %v545 = vadd.f32 %v542, 1e-05
  %v546 = vrsqrt.pop %v545
  %v547 = vmul.f32 %v543, %v546
  %v548 = vmul.f32 %v544, %v546
  %v549 = vmul.f32 %v547, 0.5
  %v550 = vmul.f32 %v548, 0.5
  %v551 = vmul.f32 %v547, 0.044715
  %v552 = vmul.f32 %v548, 0.044715
  %v553 = vmul.f32 %v551, %v547
  %v554 = vmul.f32 %v552, %v548
  %v555 = vmul.f32 %v553, %v547
  %v556 = vmul.f32 %v554, %v548
  %v557 = vadd.f32 %v547, %v555
  %v558 = vadd.f32 %v548, %v556
  %v559 = vmul.f32 %v557, 0.7978846
  %v560 = vmul.f32 %v558, 0.7978846
  %v561 = vtanh.pop %v559
  %v562 = vtanh.pop %v560
  %v563 = vadd.f32 %v561, 1.0
  %v564 = vadd.f32 %v562, 1.0
  %v565 = vmul.f32 %v549, %v563
  %v566 = vmul.f32 %v550, %v564
  %v567 = vpack.c.bf16 %v566, %v565
  %v569 = vlaneseq
  %v570 = vshrl.u32 %v569, 7
  %v571 = vsub.s32 0, %v570
  %v572 = vrot.slane %v90, %v571
  %v590 = vunpack.c.l.b16 %v74
  %v591 = vunpack.c.l.b16 %v75
  %v592 = vunpack.c.l.b16 %v76
  %v593 = vunpack.c.l.b16 %v77
  %v594 = vunpack.c.l.b16 %v78
  %v595 = vunpack.c.l.b16 %v79
  %v596 = vunpack.c.l.b16 %v80
  %v597 = vunpack.c.l.b16 %v81
  %v598 = vunpack.c.l.b16 %v82
  %v599 = vunpack.c.l.b16 %v83
  %v600 = vunpack.c.l.b16 %v84
  %v601 = vunpack.c.l.b16 %v85
  %v602 = vunpack.c.l.b16 %v86
  %v603 = vunpack.c.l.b16 %v87
  %v604 = vunpack.c.l.b16 %v88
  %v605 = vunpack.c.l.b16 %v89
  %v606 = vpack.c.b16 %v591, %v590
  %v607 = vpack.c.b16 %v593, %v592
  %v608 = vpack.c.b16 %v595, %v594
  %v609 = vpack.c.b16 %v597, %v596
  %v610 = vpack.c.b16 %v599, %v598
  %v611 = vpack.c.b16 %v601, %v600
  %v612 = vpack.c.b16 %v603, %v602
  %v613 = vpack.c.b16 %v605, %v604
  %622 = vmatprep.subr.bf16.mxu0 0
  %623 = vmatpush1.bf16.msra.mxu0 %v613
  %624 = vmatprep.subr.bf16.mxu0 0
  %625 = vmatpush1.bf16.msra.mxu0 %v612
  %626 = vmatprep.subr.bf16.mxu0 0
  %627 = vmatpush1.bf16.msra.mxu0 %v611
  %628 = vmatprep.subr.bf16.mxu0 0
  %629 = vmatpush1.bf16.msra.mxu0 %v610
  %630 = vmatprep.subr.bf16.mxu0 0
  %631 = vmatpush1.bf16.msra.mxu0 %v609
  %632 = vmatprep.subr.bf16.mxu0 0
  %633 = vmatpush1.bf16.msra.mxu0 %v608
  %634 = vmatprep.subr.bf16.mxu0 0
  %635 = vmatpush1.bf16.msra.mxu0 %v607
  %636 = vmatprep.subr.bf16.mxu0 0
  %637 = vmatpush1.bf16.msra.mxu0 %v606
  %638 = vmatprep.subr.bf16.mxu0 0
  %639 = vmatpush2.bf16.msra.mxu0 0
  %640 = vmatprep.subr.bf16.mxu0 0
  %641 = vmatpush2.bf16.msra.mxu0 0
  %642 = vmatprep.subr.bf16.mxu0 0
  %643 = vmatpush2.bf16.msra.mxu0 0
  %644 = vmatprep.subr.bf16.mxu0 0
  %645 = vmatpush2.bf16.msra.mxu0 0
  %646 = vmatprep.subr.bf16.mxu0 0
  %647 = vmatpush2.bf16.msra.mxu0 0
  %648 = vmatprep.subr.bf16.mxu0 0
  %649 = vmatpush2.bf16.msra.mxu0 0
  %650 = vmatprep.subr.bf16.mxu0 0
  %651 = vmatpush2.bf16.msra.mxu0 0
  %652 = vmatprep.subr.bf16.mxu0 0
  %653 = vmatpush2.bf16.msra.mxu0 0
  %654 = vmatprep.mubr.bf16.mxu0 0
  %655 = vmatmul.mubr.bf16.gmra.mxu0 %v567
  %v656 = vpop.f32.mrf.mxu0
  %v657 = vadd.f32 %v572, %v656
  %v658 = vpop.f32.mrf.mxu0
  %v659 = vpop.f32.mrf.mxu0
  %v660 = vadd.f32 %v572, %v659
  %v661 = vpop.f32.mrf.mxu0
  %662 = vdwg.mxu0
  %v663 = vadd.f32 %v403, %v657
  %v664 = vadd.f32 %v404, %v660
  %s665 = scalar_lea.vmem %s1, 64
  %v666 = vld [vmem:[%s665] sm:$0xf]
  %v667 = vld [vmem:[%s665 + $0x4] sm:$0xf]
  %v668 = vld [vmem:[%s665 + $0x8] sm:$0xf]
  %v669 = vld [vmem:[%s665 + $0xc] sm:$0xf]
  %v670 = vld [vmem:[%s665 + $0x10] sm:$0xf]
  %v671 = vld [vmem:[%s665 + $0x14] sm:$0xf]
  %v672 = vld [vmem:[%s665 + $0x18] sm:$0xf]
  %v673 = vld [vmem:[%s665 + $0x1c] sm:$0xf]
  %v674 = vld [vmem:[%s665 + $0x20] sm:$0xf]
  %v675 = vld [vmem:[%s665 + $0x24] sm:$0xf]
  %v676 = vld [vmem:[%s665 + $0x28] sm:$0xf]
  %v677 = vld [vmem:[%s665 + $0x2c] sm:$0xf]
  %v678 = vld [vmem:[%s665 + $0x30] sm:$0xf]
  %v679 = vld [vmem:[%s665 + $0x34] sm:$0xf]
  %v680 = vld [vmem:[%s665 + $0x38] sm:$0xf]
  %v681 = vld [vmem:[%s665 + $0x3c] sm:$0xf]
  %s682 = scalar_lea.vmem %s2, 64
  %v683 = vld [vmem:[%s682] sm:$0xf]
  %v684 = vld [vmem:[%s682 + $0x4] sm:$0xf]
  %v685 = vld [vmem:[%s682 + $0x8] sm:$0xf]
  %v686 = vld [vmem:[%s682 + $0xc] sm:$0xf]
  %v687 = vld [vmem:[%s682 + $0x10] sm:$0xf]
  %v688 = vld [vmem:[%s682 + $0x14] sm:$0xf]
  %v689 = vld [vmem:[%s682 + $0x18] sm:$0xf]
  %v690 = vld [vmem:[%s682 + $0x1c] sm:$0xf]
  %v691 = vld [vmem:[%s682 + $0x20] sm:$0xf]
  %v692 = vld [vmem:[%s682 + $0x24] sm:$0xf]
  %v693 = vld [vmem:[%s682 + $0x28] sm:$0xf]
  %v694 = vld [vmem:[%s682 + $0x2c] sm:$0xf]
  %v695 = vld [vmem:[%s682 + $0x30] sm:$0xf]
  %v696 = vld [vmem:[%s682 + $0x34] sm:$0xf]
  %v697 = vld [vmem:[%s682 + $0x38] sm:$0xf]
  %v698 = vld [vmem:[%s682 + $0x3c] sm:$0xf]
  %s699 = scalar_lea.vmem %s3, 64
  %v700 = vld [vmem:[%s699] sm:$0xf]
  %v701 = vld [vmem:[%s699 + $0x4] sm:$0xf]
  %v702 = vld [vmem:[%s699 + $0x8] sm:$0xf]
  %v703 = vld [vmem:[%s699 + $0xc] sm:$0xf]
  %v704 = vld [vmem:[%s699 + $0x10] sm:$0xf]
  %v705 = vld [vmem:[%s699 + $0x14] sm:$0xf]
  %v706 = vld [vmem:[%s699 + $0x18] sm:$0xf]
  %v707 = vld [vmem:[%s699 + $0x1c] sm:$0xf]
  %v708 = vld [vmem:[%s699 + $0x20] sm:$0xf]
  %v709 = vld [vmem:[%s699 + $0x24] sm:$0xf]
  %v710 = vld [vmem:[%s699 + $0x28] sm:$0xf]
  %v711 = vld [vmem:[%s699 + $0x2c] sm:$0xf]
  %v712 = vld [vmem:[%s699 + $0x30] sm:$0xf]
  %v713 = vld [vmem:[%s699 + $0x34] sm:$0xf]
  %v714 = vld [vmem:[%s699 + $0x38] sm:$0xf]
  %v715 = vld [vmem:[%s699 + $0x3c] sm:$0xf]
  %s716 = scalar_lea.vmem %s4, 64
  %v717 = vld [vmem:[%s716] sm:$0xf]
  %v718 = vld [vmem:[%s716 + $0x4] sm:$0xf]
  %v719 = vld [vmem:[%s716 + $0x8] sm:$0xf]
  %v720 = vld [vmem:[%s716 + $0xc] sm:$0xf]
  %v721 = vld [vmem:[%s716 + $0x10] sm:$0xf]
  %v722 = vld [vmem:[%s716 + $0x14] sm:$0xf]
  %v723 = vld [vmem:[%s716 + $0x18] sm:$0xf]
  %v724 = vld [vmem:[%s716 + $0x1c] sm:$0xf]
  %v725 = vld [vmem:[%s716 + $0x20] sm:$0xf]
  %v726 = vld [vmem:[%s716 + $0x24] sm:$0xf]
  %v727 = vld [vmem:[%s716 + $0x28] sm:$0xf]
  %v728 = vld [vmem:[%s716 + $0x2c] sm:$0xf]
  %v729 = vld [vmem:[%s716 + $0x30] sm:$0xf]
  %v730 = vld [vmem:[%s716 + $0x34] sm:$0xf]
  %v731 = vld [vmem:[%s716 + $0x38] sm:$0xf]
  %v732 = vld [vmem:[%s716 + $0x3c] sm:$0xf]
  %s733 = scalar_lea.vmem %s5, 1
  %v734 = vld [vmem:[%s733] sm:$0x1]
  %v735 = vadd.f32 %v663, %v664
  %v736 = vrot.slane %v735, 4
  %v737 = vadd.f32 %v735, %v736
  %v738 = vrot.slane %v737, 2
  %v739 = vadd.f32 %v737, %v738
  %v740 = vrot.slane %v739, 1
  %v741 = vadd.f32 %v739, %v740
  %v742 = vmul.f32 %v741, %v98
  %v743 = vmul.f32 %v663, %v663
  %v744 = vmul.f32 %v664, %v664
  %v745 = vadd.f32 %v743, %v744
  %v746 = vrot.slane %v745, 4
  %v747 = vadd.f32 %v745, %v746
  %v748 = vrot.slane %v747, 2
  %v749 = vadd.f32 %v747, %v748
  %v750 = vrot.slane %v749, 1
  %v751 = vadd.f32 %v749, %v750
  %v752 = vmul.f32 %v751, %v98
  %v753 = vmul.f32 %v742, %v742
  %v754 = vsub.f32 %v752, %v753
  %v755 = vmax.f32 %v754, 0.0
  %v756 = vsub.f32 %v663, %v742
  %v757 = vsub.f32 %v664, %v742
  %v758 = vadd.f32 %v755, 1e-05
  %v759 = vrsqrt.pop %v758
  %v760 = vmul.f32 %v756, %v759
  %v761 = vmul.f32 %v757, %v759
  %v762 = vpack.c.bf16 %v761, %v760
  %v779 = vunpack.c.l.b16 %v666
  %v780 = vunpack.c.l.b16 %v667
  %v781 = vunpack.c.l.b16 %v668
  %v782 = vunpack.c.l.b16 %v669
  %v783 = vunpack.c.l.b16 %v670
  %v784 = vunpack.c.l.b16 %v671
  %v785 = vunpack.c.l.b16 %v672
  %v786 = vunpack.c.l.b16 %v673
  %v787 = vunpack.c.l.b16 %v674
  %v788 = vunpack.c.l.b16 %v675
  %v789 = vunpack.c.l.b16 %v676
  %v790 = vunpack.c.l.b16 %v677
  %v791 = vunpack.c.l.b16 %v678
  %v792 = vunpack.c.l.b16 %v679
  %v793 = vunpack.c.l.b16 %v680
  %v794 = vunpack.c.l.b16 %v681
  %v795 = vpack.c.b16 %v780, %v779
  %v796 = vpack.c.b16 %v782, %v781
  %v797 = vpack.c.b16 %v784, %v783
  %v798 = vpack.c.b16 %v786, %v785
  %v799 = vpack.c.b16 %v788, %v787
  %v800 = vpack.c.b16 %v790, %v789
  %v801 = vpack.c.b16 %v792, %v791
  %v802 = vpack.c.b16 %v794, %v793
  %811 = vmatprep.subr.bf16.mxu0 0
  %812 = vmatpush1.bf16.msra.mxu0 %v802
  %813 = vmatprep.subr.bf16.mxu0 0
  %814 = vmatpush1.bf16.msra.mxu0 %v801
  %815 = vmatprep.subr.bf16.mxu0 0
  %816 = vmatpush1.bf16.msra.mxu0 %v800
  %817 = vmatprep.subr.bf16.mxu0 0
  %818 = vmatpush1.bf16.msra.mxu0 %v799
  %819 = vmatprep.subr.bf16.mxu0 0
  %820 = vmatpush1.bf16.msra.mxu0 %v798
  %821 = vmatprep.subr.bf16.mxu0 0
  %822 = vmatpush1.bf16.msra.mxu0 %v797
  %823 = vmatprep.subr.bf16.mxu0 0
  %824 = vmatpush1.bf16.msra.mxu0 %v796
  %825 = vmatprep.subr.bf16.mxu0 0
  %826 = vmatpush1.bf16.msra.mxu0 %v795
  %827 = vmatprep.subr.bf16.mxu0 0
  %828 = vmatpush2.bf16.msra.mxu0 0
  %829 = vmatprep.subr.bf16.mxu0 0
  %830 = vmatpush2.bf16.msra.mxu0 0
  %831 = vmatprep.subr.bf16.mxu0 0
  %832 = vmatpush2.bf16.msra.mxu0 0
  %833 = vmatprep.subr.bf16.mxu0 0
  %834 = vmatpush2.bf16.msra.mxu0 0
  %835 = vmatprep.subr.bf16.mxu0 0
  %836 = vmatpush2.bf16.msra.mxu0 0
  %837 = vmatprep.subr.bf16.mxu0 0
  %838 = vmatpush2.bf16.msra.mxu0 0
  %839 = vmatprep.subr.bf16.mxu0 0
  %840 = vmatpush2.bf16.msra.mxu0 0
  %841 = vmatprep.subr.bf16.mxu0 0
  %842 = vmatpush2.bf16.msra.mxu0 0
  %843 = vmatprep.mubr.bf16.mxu0 0
  %844 = vmatmul.mubr.bf16.gmra.mxu0 %v762
  %v845 = vpop.f32.mrf.mxu0
  %v846 = vadd.f32 0.0, %v845
  %v847 = vpop.f32.mrf.mxu0
  %v848 = vpop.f32.mrf.mxu0
  %v849 = vadd.f32 0.0, %v848
  %v850 = vpop.f32.mrf.mxu0
  %851 = vdwg.mxu0
  %v868 = vunpack.c.l.b16 %v683
  %v869 = vunpack.c.l.b16 %v684
  %v870 = vunpack.c.l.b16 %v685
  %v871 = vunpack.c.l.b16 %v686
  %v872 = vunpack.c.l.b16 %v687
  %v873 = vunpack.c.l.b16 %v688
  %v874 = vunpack.c.l.b16 %v689
  %v875 = vunpack.c.l.b16 %v690
  %v876 = vunpack.c.l.b16 %v691
  %v877 = vunpack.c.l.b16 %v692
  %v878 = vunpack.c.l.b16 %v693
  %v879 = vunpack.c.l.b16 %v694
  %v880 = vunpack.c.l.b16 %v695
  %v881 = vunpack.c.l.b16 %v696
  %v882 = vunpack.c.l.b16 %v697
  %v883 = vunpack.c.l.b16 %v698
  %v884 = vpack.c.b16 %v869, %v868
  %v885 = vpack.c.b16 %v871, %v870
  %v886 = vpack.c.b16 %v873, %v872
  %v887 = vpack.c.b16 %v875, %v874
  %v888 = vpack.c.b16 %v877, %v876
  %v889 = vpack.c.b16 %v879, %v878
  %v890 = vpack.c.b16 %v881, %v880
  %v891 = vpack.c.b16 %v883, %v882
  %900 = vmatprep.subr.bf16.mxu0 0
  %901 = vmatpush1.bf16.msra.mxu0 %v891
  %902 = vmatprep.subr.bf16.mxu0 0
  %903 = vmatpush1.bf16.msra.mxu0 %v890
  %904 = vmatprep.subr.bf16.mxu0 0
  %905 = vmatpush1.bf16.msra.mxu0 %v889
  %906 = vmatprep.subr.bf16.mxu0 0
  %907 = vmatpush1.bf16.msra.mxu0 %v888
  %908 = vmatprep.subr.bf16.mxu0 0
  %909 = vmatpush1.bf16.msra.mxu0 %v887
  %910 = vmatprep.subr.bf16.mxu0 0
  %911 = vmatpush1.bf16.msra.mxu0 %v886
  %912 = vmatprep.subr.bf16.mxu0 0
  %913 = vmatpush1.bf16.msra.mxu0 %v885
  %914 = vmatprep.subr.bf16.mxu0 0
  %915 = vmatpush1.bf16.msra.mxu0 %v884
  %916 = vmatprep.subr.bf16.mxu0 0
  %917 = vmatpush2.bf16.msra.mxu0 0
  %918 = vmatprep.subr.bf16.mxu0 0
  %919 = vmatpush2.bf16.msra.mxu0 0
  %920 = vmatprep.subr.bf16.mxu0 0
  %921 = vmatpush2.bf16.msra.mxu0 0
  %922 = vmatprep.subr.bf16.mxu0 0
  %923 = vmatpush2.bf16.msra.mxu0 0
  %924 = vmatprep.subr.bf16.mxu0 0
  %925 = vmatpush2.bf16.msra.mxu0 0
  %926 = vmatprep.subr.bf16.mxu0 0
  %927 = vmatpush2.bf16.msra.mxu0 0
  %928 = vmatprep.subr.bf16.mxu0 0
  %929 = vmatpush2.bf16.msra.mxu0 0
  %930 = vmatprep.subr.bf16.mxu0 0
  %931 = vmatpush2.bf16.msra.mxu0 0
  %932 = vmatprep.mubr.bf16.mxu0 0
  %933 = vmatmul.mubr.bf16.gmra.mxu0 %v762
  %v934 = vpop.f32.mrf.mxu0
  %v935 = vadd.f32 0.0, %v934
  %v936 = vpop.f32.mrf.mxu0
  %v937 = vpop.f32.mrf.mxu0
  %v938 = vadd.f32 0.0, %v937
  %v939 = vpop.f32.mrf.mxu0
  %940 = vdwg.mxu0
  %v941 = vpack.c.bf16 %v849, %v846
  %942 = vmatprep.subr.bf16.mxu0 0
  %943 = vmatpush1.bf16.xpose.msra.mxu0 0
  %944 = vmatprep.subr.bf16.mxu0 0
  %945 = vmatpush1.bf16.xpose.msra.mxu0 0
  %946 = vmatprep.subr.bf16.mxu0 0
  %947 = vmatpush1.bf16.xpose.msra.mxu0 0
  %948 = vmatprep.subr.bf16.mxu0 0
  %949 = vmatpush1.bf16.xpose.msra.mxu0 0
  %950 = vmatprep.subr.bf16.mxu0 0
  %951 = vmatpush1.bf16.xpose.msra.mxu0 0
  %952 = vmatprep.subr.bf16.mxu0 0
  %953 = vmatpush1.bf16.xpose.msra.mxu0 0
  %954 = vmatprep.subr.bf16.mxu0 0
  %955 = vmatpush1.bf16.xpose.msra.mxu0 0
  %956 = vmatprep.subr.bf16.mxu0 0
  %957 = vmatpush1.bf16.xpose.msra.mxu0 %v762
  %958 = vmatprep.subr.bf16.mxu0 0
  %959 = vmatpush2.bf16.xpose.msra.mxu0 0
  %960 = vmatprep.subr.bf16.mxu0 0
  %961 = vmatpush2.bf16.xpose.msra.mxu0 0
  %962 = vmatprep.subr.bf16.mxu0 0
  %963 = vmatpush2.bf16.xpose.msra.mxu0 0
  %964 = vmatprep.subr.bf16.mxu0 0
  %965 = vmatpush2.bf16.xpose.msra.mxu0 0
  %966 = vmatprep.subr.bf16.mxu0 0
  %967 = vmatpush2.bf16.xpose.msra.mxu0 0
  %968 = vmatprep.subr.bf16.mxu0 0
  %969 = vmatpush2.bf16.xpose.msra.mxu0 0
  %970 = vmatprep.subr.bf16.mxu0 0
  %971 = vmatpush2.bf16.xpose.msra.mxu0 0
  %972 = vmatprep.subr.bf16.mxu0 0
  %973 = vmatpush2.bf16.xpose.msra.mxu0 0
  %974 = vmatprep.mubr.bf16.mxu0 0
  %975 = vmatmul.mubr.bf16.gmra.mxu0 %v941
  %v976 = vpop.f32.mrf.mxu0
  %v977 = vadd.f32 0.0, %v976
  %v978 = vpop.f32.mrf.mxu0
  %v979 = vpop.f32.mrf.mxu0
  %v980 = vadd.f32 0.0, %v979
  %v981 = vpop.f32.mrf.mxu0
  %982 = vdwg.mxu0
  %v983 = vmul.f32 %v977, 0.35355338
  %v984 = vmul.f32 %v980, 0.35355338
  %v985 = vmul.f32 %v983, 1.442695
  %v986 = vpow.pop %v985
  %v987 = vmul.f32 %v984, 1.442695
  %v988 = vpow.pop %v987
  %v989 = vsel %vm346, %v986, 0.0
  %990 = vadd.xlane.f32.xlu0 %v989
  %v991 = vpop.xlane.xlu0 %990
  %v992 = vsel %vm346, %v988, 0.0
  %993 = vadd.xlane.f32.xlu0 %v992
  %v994 = vpop.xlane.xlu0 %993
  %v995 = vrcp.pop %v991
  %v996 = vrcp.pop %v994
  %v997 = vmul.f32 %v986, %v995
  %v998 = vmul.f32 %v988, %v996
  %v999 = vpack.c.bf16 %v998, %v997
  %v1000 = vpack.c.bf16 %v938, %v935
  %v1002 = vsel %vm346, %v999, 0
  %1004 = vmatprep.subr.bf16.mxu0 0
  %1005 = vmatpush1.bf16.msra.mxu0 0
  %1006 = vmatprep.subr.bf16.mxu0 0
  %1007 = vmatpush1.bf16.msra.mxu0 0
  %1008 = vmatprep.subr.bf16.mxu0 0
  %1009 = vmatpush1.bf16.msra.mxu0 0
  %1010 = vmatprep.subr.bf16.mxu0 0
  %1011 = vmatpush1.bf16.msra.mxu0 0
  %1012 = vmatprep.subr.bf16.mxu0 0
  %1013 = vmatpush1.bf16.msra.mxu0 0
  %1014 = vmatprep.subr.bf16.mxu0 0
  %1015 = vmatpush1.bf16.msra.mxu0 0
  %1016 = vmatprep.subr.bf16.mxu0 0
  %1017 = vmatpush1.bf16.msra.mxu0 0
  %1018 = vmatprep.subr.bf16.mxu0 0
  %1019 = vmatpush1.bf16.msra.mxu0 %v1000
  %1020 = vmatprep.subr.bf16.mxu0 0
  %1021 = vmatpush2.bf16.msra.mxu0 0
  %1022 = vmatprep.subr.bf16.mxu0 0
  %1023 = vmatpush2.bf16.msra.mxu0 0
  %1024 = vmatprep.subr.bf16.mxu0 0
  %1025 = vmatpush2.bf16.msra.mxu0 0
  %1026 = vmatprep.subr.bf16.mxu0 0
  %1027 = vmatpush2.bf16.msra.mxu0 0
  %1028 = vmatprep.subr.bf16.mxu0 0
  %1029 = vmatpush2.bf16.msra.mxu0 0
  %1030 = vmatprep.subr.bf16.mxu0 0
  %1031 = vmatpush2.bf16.msra.mxu0 0
  %1032 = vmatprep.subr.bf16.mxu0 0
  %1033 = vmatpush2.bf16.msra.mxu0 0
  %1034 = vmatprep.subr.bf16.mxu0 0
  %1035 = vmatpush2.bf16.msra.mxu0 0
  %1036 = vmatprep.mubr.bf16.mxu0 0
  %1037 = vmatmul.mubr.bf16.gmra.mxu0 %v1002
  %v1038 = vpop.f32.mrf.mxu0
  %v1039 = vadd.f32 0.0, %v1038
  %v1040 = vpop.f32.mrf.mxu0
  %v1041 = vpop.f32.mrf.mxu0
  %v1042 = vadd.f32 0.0, %v1041
  %v1043 = vpop.f32.mrf.mxu0
  %1044 = vdwg.mxu0
  %v1045 = vadd.f32 %v663, %v1039
  %v1046 = vadd.f32 %v664, %v1042
  %v1047 = vadd.f32 %v1045, %v1046
  %v1048 = vrot.slane %v1047, 4
  %v1049 = vadd.f32 %v1047, %v1048
  %v1050 = vrot.slane %v1049, 2
  %v1051 = vadd.f32 %v1049, %v1050
  %v1052 = vrot.slane %v1051, 1
  %v1053 = vadd.f32 %v1051, %v1052
  %v1054 = vmul.f32 %v1053, %v98
  %v1055 = vmul.f32 %v1045, %v1045
  %v1056 = vmul.f32 %v1046, %v1046
  %v1057 = vadd.f32 %v1055, %v1056
  %v1058 = vrot.slane %v1057, 4
  %v1059 = vadd.f32 %v1057, %v1058
  %v1060 = vrot.slane %v1059, 2
  %v1061 = vadd.f32 %v1059, %v1060
  %v1062 = vrot.slane %v1061, 1
  %v1063 = vadd.f32 %v1061, %v1062
  %v1064 = vmul.f32 %v1063, %v98
  %v1065 = vmul.f32 %v1054, %v1054
  %v1066 = vsub.f32 %v1064, %v1065
  %v1067 = vmax.f32 %v1066, 0.0
  %v1068 = vsub.f32 %v1045, %v1054
  %v1069 = vsub.f32 %v1046, %v1054
  %v1070 = vadd.f32 %v1067, 1e-05
  %v1071 = vrsqrt.pop %v1070
  %v1072 = vmul.f32 %v1068, %v1071
  %v1073 = vmul.f32 %v1069, %v1071
  %v1074 = vpack.c.bf16 %v1073, %v1072
  %v1091 = vunpack.c.l.b16 %v700
  %v1092 = vunpack.c.l.b16 %v701
  %v1093 = vunpack.c.l.b16 %v702
  %v1094 = vunpack.c.l.b16 %v703
  %v1095 = vunpack.c.l.b16 %v704
  %v1096 = vunpack.c.l.b16 %v705
  %v1097 = vunpack.c.l.b16 %v706
  %v1098 = vunpack.c.l.b16 %v707
  %v1099 = vunpack.c.l.b16 %v708
  %v1100 = vunpack.c.l.b16 %v709
  %v1101 = vunpack.c.l.b16 %v710
  %v1102 = vunpack.c.l.b16 %v711
  %v1103 = vunpack.c.l.b16 %v712
  %v1104 = vunpack.c.l.b16 %v713
  %v1105 = vunpack.c.l.b16 %v714
  %v1106 = vunpack.c.l.b16 %v715
  %v1107 = vpack.c.b16 %v1092, %v1091
  %v1108 = vpack.c.b16 %v1094, %v1093
  %v1109 = vpack.c.b16 %v1096, %v1095
  %v1110 = vpack.c.b16 %v1098, %v1097
  %v1111 = vpack.c.b16 %v1100, %v1099
  %v1112 = vpack.c.b16 %v1102, %v1101
  %v1113 = vpack.c.b16 %v1104, %v1103
  %v1114 = vpack.c.b16 %v1106, %v1105
  %1123 = vmatprep.subr.bf16.mxu0 0
  %1124 = vmatpush1.bf16.msra.mxu0 %v1114
  %1125 = vmatprep.subr.bf16.mxu0 0
  %1126 = vmatpush1.bf16.msra.mxu0 %v1113
  %1127 = vmatprep.subr.bf16.mxu0 0
  %1128 = vmatpush1.bf16.msra.mxu0 %v1112
  %1129 = vmatprep.subr.bf16.mxu0 0
  %1130 = vmatpush1.bf16.msra.mxu0 %v1111
  %1131 = vmatprep.subr.bf16.mxu0 0
  %1132 = vmatpush1.bf16.msra.mxu0 %v1110
  %1133 = vmatprep.subr.bf16.mxu0 0
  %1134 = vmatpush1.bf16.msra.mxu0 %v1109
  %1135 = vmatprep.subr.bf16.mxu0 0
  %1136 = vmatpush1.bf16.msra.mxu0 %v1108
  %1137 = vmatprep.subr.bf16.mxu0 0
  %1138 = vmatpush1.bf16.msra.mxu0 %v1107
  %1139 = vmatprep.subr.bf16.mxu0 0
  %1140 = vmatpush2.bf16.msra.mxu0 0
  %1141 = vmatprep.subr.bf16.mxu0 0
  %1142 = vmatpush2.bf16.msra.mxu0 0
  %1143 = vmatprep.subr.bf16.mxu0 0
  %1144 = vmatpush2.bf16.msra.mxu0 0
  %1145 = vmatprep.subr.bf16.mxu0 0
  %1146 = vmatpush2.bf16.msra.mxu0 0
  %1147 = vmatprep.subr.bf16.mxu0 0
  %1148 = vmatpush2.bf16.msra.mxu0 0
  %1149 = vmatprep.subr.bf16.mxu0 0
  %1150 = vmatpush2.bf16.msra.mxu0 0
  %1151 = vmatprep.subr.bf16.mxu0 0
  %1152 = vmatpush2.bf16.msra.mxu0 0
  %1153 = vmatprep.subr.bf16.mxu0 0
  %1154 = vmatpush2.bf16.msra.mxu0 0
  %1155 = vmatprep.mubr.bf16.mxu0 0
  %1156 = vmatmul.mubr.bf16.gmra.mxu0 %v1074
  %v1157 = vpop.f32.mrf.mxu0
  %v1158 = vadd.f32 0.0, %v1157
  %v1159 = vpop.f32.mrf.mxu0
  %v1160 = vpop.f32.mrf.mxu0
  %v1161 = vadd.f32 0.0, %v1160
  %v1162 = vpop.f32.mrf.mxu0
  %1163 = vdwg.mxu0
  %v1164 = vadd.f32 %v1158, %v1161
  %v1165 = vrot.slane %v1164, 4
  %v1166 = vadd.f32 %v1164, %v1165
  %v1167 = vrot.slane %v1166, 2
  %v1168 = vadd.f32 %v1166, %v1167
  %v1169 = vrot.slane %v1168, 1
  %v1170 = vadd.f32 %v1168, %v1169
  %v1171 = vmul.f32 %v1170, %v98
  %v1172 = vmul.f32 %v1158, %v1158
  %v1173 = vmul.f32 %v1161, %v1161
  %v1174 = vadd.f32 %v1172, %v1173
  %v1175 = vrot.slane %v1174, 4
  %v1176 = vadd.f32 %v1174, %v1175
  %v1177 = vrot.slane %v1176, 2
  %v1178 = vadd.f32 %v1176, %v1177
  %v1179 = vrot.slane %v1178, 1
  %v1180 = vadd.f32 %v1178, %v1179
  %v1181 = vmul.f32 %v1180, %v98
  %v1182 = vmul.f32 %v1171, %v1171
  %v1183 = vsub.f32 %v1181, %v1182
  %v1184 = vmax.f32 %v1183, 0.0
  %v1185 = vsub.f32 %v1158, %v1171
  %v1186 = vsub.f32 %v1161, %v1171
  %v1187 = vadd.f32 %v1184, 1e-05
  %v1188 = vrsqrt.pop %v1187
  %v1189 = vmul.f32 %v1185, %v1188
  %v1190 = vmul.f32 %v1186, %v1188
  %v1191 = vmul.f32 %v1189, 0.5
  %v1192 = vmul.f32 %v1190, 0.5
  %v1193 = vmul.f32 %v1189, 0.044715
  %v1194 = vmul.f32 %v1190, 0.044715
  %v1195 = vmul.f32 %v1193, %v1189
  %v1196 = vmul.f32 %v1194, %v1190
  %v1197 = vmul.f32 %v1195, %v1189
  %v1198 = vmul.f32 %v1196, %v1190
  %v1199 = vadd.f32 %v1189, %v1197
  %v1200 = vadd.f32 %v1190, %v1198
  %v1201 = vmul.f32 %v1199, 0.7978846
  %v1202 = vmul.f32 %v1200, 0.7978846
  %v1203 = vtanh.pop %v1201
  %v1204 = vtanh.pop %v1202
  %v1205 = vadd.f32 %v1203, 1.0
  %v1206 = vadd.f32 %v1204, 1.0
  %v1207 = vmul.f32 %v1191, %v1205
  %v1208 = vmul.f32 %v1192, %v1206
  %v1209 = vpack.c.bf16 %v1208, %v1207
  %v1211 = vlaneseq
  %v1212 = vshrl.u32 %v1211, 7
  %v1213 = vsub.s32 0, %v1212
  %v1214 = vrot.slane %v734, %v1213
  %v1232 = vunpack.c.l.b16 %v717
  %v1233 = vunpack.c.l.b16 %v718
  %v1234 = vunpack.c.l.b16 %v719
  %v1235 = vunpack.c.l.b16 %v720
  %v1236 = vunpack.c.l.b16 %v721
  %v1237 = vunpack.c.l.b16 %v722
  %v1238 = vunpack.c.l.b16 %v723
  %v1239 = vunpack.c.l.b16 %v724
  %v1240 = vunpack.c.l.b16 %v725
  %v1241 = vunpack.c.l.b16 %v726
  %v1242 = vunpack.c.l.b16 %v727
  %v1243 = vunpack.c.l.b16 %v728
  %v1244 = vunpack.c.l.b16 %v729
  %v1245 = vunpack.c.l.b16 %v730
  %v1246 = vunpack.c.l.b16 %v731
  %v1247 = vunpack.c.l.b16 %v732
  %v1248 = vpack.c.b16 %v1233, %v1232
  %v1249 = vpack.c.b16 %v1235, %v1234
  %v1250 = vpack.c.b16 %v1237, %v1236
  %v1251 = vpack.c.b16 %v1239, %v1238
  %v1252 = vpack.c.b16 %v1241, %v1240
  %v1253 = vpack.c.b16 %v1243, %v1242
  %v1254 = vpack.c.b16 %v1245, %v1244
  %v1255 = vpack.c.b16 %v1247, %v1246
  %1264 = vmatprep.subr.bf16.mxu0 0
  %1265 = vmatpush1.bf16.msra.mxu0 %v1255
  %1266 = vmatprep.subr.bf16.mxu0 0
  %1267 = vmatpush1.bf16.msra.mxu0 %v1254
  %1268 = vmatprep.subr.bf16.mxu0 0
  %1269 = vmatpush1.bf16.msra.mxu0 %v1253
  %1270 = vmatprep.subr.bf16.mxu0 0
  %1271 = vmatpush1.bf16.msra.mxu0 %v1252
  %1272 = vmatprep.subr.bf16.mxu0 0
  %1273 = vmatpush1.bf16.msra.mxu0 %v1251
  %1274 = vmatprep.subr.bf16.mxu0 0
  %1275 = vmatpush1.bf16.msra.mxu0 %v1250
  %1276 = vmatprep.subr.bf16.mxu0 0
  %1277 = vmatpush1.bf16.msra.mxu0 %v1249
  %1278 = vmatprep.subr.bf16.mxu0 0
  %1279 = vmatpush1.bf16.msra.mxu0 %v1248
  %1280 = vmatprep.subr.bf16.mxu0 0
  %1281 = vmatpush2.bf16.msra.mxu0 0
  %1282 = vmatprep.subr.bf16.mxu0 0
  %1283 = vmatpush2.bf16.msra.mxu0 0
  %1284 = vmatprep.subr.bf16.mxu0 0
  %1285 = vmatpush2.bf16.msra.mxu0 0
  %1286 = vmatprep.subr.bf16.mxu0 0
  %1287 = vmatpush2.bf16.msra.mxu0 0
  %1288 = vmatprep.subr.bf16.mxu0 0
  %1289 = vmatpush2.bf16.msra.mxu0 0
  %1290 = vmatprep.subr.bf16.mxu0 0
  %1291 = vmatpush2.bf16.msra.mxu0 0
  %1292 = vmatprep.subr.bf16.mxu0 0
  %1293 = vmatpush2.bf16.msra.mxu0 0
  %1294 = vmatprep.subr.bf16.mxu0 0
  %1295 = vmatpush2.bf16.msra.mxu0 0
  %1296 = vmatprep.mubr.bf16.mxu0 0
  %1297 = vmatmul.mubr.bf16.gmra.mxu0 %v1209
  %v1298 = vpop.f32.mrf.mxu0
  %v1299 = vadd.f32 %v1214, %v1298
  %v1300 = vpop.f32.mrf.mxu0
  %v1301 = vpop.f32.mrf.mxu0
  %v1302 = vadd.f32 %v1214, %v1301
  %v1303 = vpop.f32.mrf.mxu0
  %1304 = vdwg.mxu0
  %v1305 = vadd.f32 %v1045, %v1299
  %v1306 = vadd.f32 %v1046, %v1302
  %1307 = vst [vmem:[%s6] sm:$0xff] %v1305
  %1308 = vst [vmem:[%s6 + $0x8] sm:$0xff] %v1306
  // Predicated region
  $region26: #{transformer_forward.1} parent=0 // pred_check
    _
  $region27: #{transformer_forward.1} parent=0 // pred_check_branch
    %1310 = sbr.rel (0) target = $region29
  $region28: #{transformer_forward.1} parent=0 // pred_region
    _
  $region29: #{transformer_forward.1} parent=0 // pred_fallthru
    _
  // Predicated region
  $region30: #{transformer_forward.1} parent=0 // pred_check
    _
  $region31: #{transformer_forward.1} parent=0 // pred_check_branch
    %1312 = sbr.rel (0) target = $region33
  $region32: #{transformer_forward.1} parent=0 // pred_region
    _
  $region33: #{transformer_forward.1} parent=0 // pred_fallthru
    _

</llo_original>
